<compile_context>
chip_gen: v7x
topology: tpu7x:2x2x1
jax: 0.10.0
libtpu: 0.0.40
codegen_flags: <defaults>
</compile_context>

<pallas_src>
import functools

import jax
import jax.numpy as jnp
from jax.experimental import pallas as pl
from jax.experimental.pallas import tpu as pltpu


def _round_up(a, b):
    return (a + b - 1) // b * b


def _vmem_capacity_bytes():
    """Best-effort per-core VMEM capacity query; conservative fallback."""
    try:
        info = pltpu.get_tpu_info()
        for name in ("vmem_capacity_bytes", "vmem_bytes"):
            v = getattr(info, name, None)
            if v:
                return int(v)
    except Exception:
        pass
    return 64 * 1024 * 1024  # v7x per-TensorCore VMEM (most conservative)


def _patch_embed_kernel(x_ref, w_ref, b_ref, o_ref):
    # x_ref: (tm, K), w_ref: (K, tn), b_ref: (1, tn), o_ref: (tm, tn)
    acc = jnp.dot(x_ref[...], w_ref[...], preferred_element_type=jnp.float32)
    o_ref[...] = (acc + b_ref[...]).astype(o_ref.dtype)


def patch_embed_matmul(patches, w_ke, bias2d, *, out_dtype, tm_target,
                       vmem_capacity, single_buffer_weights):
    """patches [M, K] @ w_ke [K, E] + bias2d [1, E] -> [M, E], no padding copies."""
    M, K = patches.shape
    Kw, E = w_ke.shape
    assert K == Kw

    in_it = jnp.dtype(patches.dtype).itemsize
    out_it = jnp.dtype(out_dtype).itemsize
    vmem_budget = int(0.45 * vmem_capacity)

    # ---- Embed-dim (N) tiling: only when the weight would blow the budget.
    wbuf0 = 1 if single_buffer_weights else 2
    tn = E
    if E > 128 and wbuf0 * K * E * in_it > vmem_budget // 3:
        tn = 512
        while tn > 128 and wbuf0 * K * tn * in_it > vmem_budget // 3:
            tn //= 2
    n_steps = int(pl.cdiv(E, tn))
    # Weight/bias are only truly grid-invariant with a single N tile.
    single_buf = bool(single_buffer_weights and n_steps == 1)
    wbuf = 1 if single_buf else 2

    # ---- Row (M) tiling: as large as the VMEM budget allows, row-aligned.
    row_align = 8 if in_it == 4 else 16

    def vmem_bytes(tm):
        return (2 * tm * K * in_it          # activation tile (double-buffered)
                + wbuf * K * tn * in_it     # weight tile
                + wbuf * tn * 4             # bias tile (f32)
                + 2 * tm * tn * out_it)     # output tile (double-buffered)

    tm = _round_up(min(tm_target, _round_up(M, row_align)), row_align)
    while vmem_bytes(tm) > vmem_budget and tm > row_align:
        tm = max(row_align, _round_up(tm // 2, row_align))
    # >= 2 M-steps when possible so the parallel axis can use both v7x TCs.
    if int(pl.cdiv(M, tm)) < 2 and tm > row_align:
        tm = max(row_align, _round_up(int(pl.cdiv(M, 2)), row_align))
    m_steps = int(pl.cdiv(M, tm))   # ragged last block: OOB writes are dropped

    # Single-buffer the grid-invariant operands (reclaims the dead 2nd buffer).
    w_kwargs = dict(pipeline_mode=pl.Buffered(buffer_count=1)) if single_buf else {}
    in_specs = [
        pl.BlockSpec((tm, K), lambda i, j: (i, 0)),
        pl.BlockSpec((K, tn), lambda i, j: (0, j), **w_kwargs),
        pl.BlockSpec((1, tn), lambda i, j: (0, j), **w_kwargs),
    ]
    out_spec = pl.BlockSpec((tm, tn), lambda i, j: (i, j))

    cost = pl.CostEstimate(
        flops=2 * M * K * E,
        transcendentals=0,
        bytes_accessed=(M * K * in_it + K * E * in_it + E * 4 + M * E * out_it),
    )
    vmem_limit = int(min(0.9 * vmem_capacity,
                         vmem_bytes(tm) + 32 * 1024 * 1024))

    return pl.pallas_call(
        _patch_embed_kernel,
        out_shape=jax.ShapeDtypeStruct((M, E), out_dtype),
        grid=(m_steps, n_steps),
        in_specs=in_specs,
        out_specs=out_spec,
        compiler_params=pltpu.CompilerParams(
            dimension_semantics=("parallel", "parallel"),
            vmem_limit_bytes=vmem_limit,
        ),
        cost_estimate=cost,
    )(patches, w_ke, bias2d)


def patch_embed_forward(x, w_ke, bias2d, *, t_patch, patch_h, patch_w,
                        embed_dim, compute_dtype, out_dtype, tm_target,
                        vmem_capacity, single_buffer_weights):
    B, C, T, H, W = x.shape
    tp, ph, pw = t_patch, patch_h, patch_w
    Tp, Hp, Wp = T // tp, H // ph, W // pw
    K = C * tp * ph * pw
    Kp = w_ke.shape[0]

    # Patch extraction (im2col): a single fused cast+transpose pass in XLA.
    # TODO(synk): fuse this gather into the kernel (per-(b,t') block, in-VMEM
    # reorder) to remove ~2 extra HBM passes of the patch tensor; the required
    # lane-crossing relayout is not reliably lowerable by Mosaic, so it stays
    # in XLA for now.
    xp = x.astype(compute_dtype).reshape(B, C, Tp, tp, Hp, ph, Wp, pw)
    xp = jnp.transpose(xp, (0, 2, 4, 6, 1, 3, 5, 7))  # B,Tp,Hp,Wp,C,tp,ph,pw
    patches = xp.reshape(B * Tp * Hp * Wp, K)
    if Kp != K:  # lane-pad the reduction dim only when not already dense
        patches = jnp.pad(patches, ((0, 0), (0, Kp - K)))

    out = patch_embed_matmul(
        patches, w_ke, bias2d,
        out_dtype=out_dtype if out_dtype is not None else x.dtype,
        tm_target=tm_target, vmem_capacity=vmem_capacity,
        single_buffer_weights=single_buffer_weights)
    # [M, E] -> [B, T', H'*W', E]  (free reshape: no padding / slicing needed)
    return out.reshape(B, Tp, Hp * Wp, embed_dim)


class PatchEmbed:
    """JAX / Pallas port of the PyTorch PatchEmbed module."""

    def __init__(self, img_size=16, patch_size=8, in_chans=4, embed_dim=32,
                 frames=8, t_patch_size=4, key=None, dtype=jnp.float32,
                 compute_dtype=jnp.bfloat16, out_dtype=None, tm_target=2048):
        img_size = (img_size, img_size)
        patch_size = (patch_size, patch_size)
        assert img_size[1] % patch_size[1] == 0
        assert img_size[0] % patch_size[0] == 0
        assert frames % t_patch_size == 0
        self.img_size = img_size
        self.patch_size = patch_size
        self.frames = frames
        self.t_patch_size = t_patch_size
        self.in_chans = in_chans
        self.embed_dim = embed_dim
        self.grid_size = img_size[0] // patch_size[0]
        self.t_grid_size = frames // t_patch_size
        self.input_size = (self.t_grid_size,
                           img_size[0] // patch_size[0],
                           img_size[1] // patch_size[1])
        self.num_patches = (img_size[1] // patch_size[1]
                            * (img_size[0] // patch_size[0])
                            * self.t_grid_size)

        # Deterministic parameter init (Conv3d weight/bias shapes).
        if key is None:
            key = jax.random.PRNGKey(0)
        kw, kb = jax.random.split(key)
        fan_in = in_chans * t_patch_size * patch_size[0] * patch_size[1]
        bound = 1.0 / (fan_in ** 0.5)
        # torch Conv3d weight: [E, C, kt, kh, kw]
        self.weight = jax.random.uniform(
            kw, (embed_dim, in_chans, t_patch_size,
                 patch_size[0], patch_size[1]),
            minval=-bound, maxval=bound, dtype=dtype)
        self.bias = jax.random.uniform(
            kb, (embed_dim,), minval=-bound, maxval=bound, dtype=dtype)

        # Kernel-side weight/bias hoisted out of __call__:
        # [E, C, kt, kh, kw] -> [K, E]; K lane-padded only if not dense; embed
        # dim left unpadded (no padded output writes).  Bias stays f32.
        K = fan_in
        Kp = _round_up(K, 128)
        w_ke = self.weight.reshape(embed_dim, K).T        # [K, E]
        if Kp != K:
            w_ke = jnp.pad(w_ke, ((0, Kp - K), (0, 0)))
        self._w_ke = w_ke.astype(compute_dtype)           # [Kp, E]
        self._bias2d = self.bias.astype(jnp.float32).reshape(1, embed_dim)

        vmem_cap = _vmem_capacity_bytes()
        common = dict(t_patch=t_patch_size, patch_h=patch_size[0],
                      patch_w=patch_size[1], embed_dim=embed_dim,
                      compute_dtype=compute_dtype, out_dtype=out_dtype,
                      tm_target=tm_target, vmem_capacity=vmem_cap)
        self._fwd_fast = jax.jit(functools.partial(
            patch_embed_forward, single_buffer_weights=True, **common))
        self._fwd_safe = jax.jit(functools.partial(
            patch_embed_forward, single_buffer_weights=False, **common))
        self._fwd = None

    def __call__(self, x):
        # x: [B, C, T, H, W]  (PyTorch NCTHW convention)
        B, C, T, H, W = x.shape
        assert H == self.img_size[0] and W == self.img_size[1]
        assert T == self.frames
        assert C == self.in_chans
        if self._fwd is None:
            # First call: prefer single-buffered weights; fall back to default
            # double-buffered specs if pipeline_mode=Buffered(1) is unsupported.
            try:
                out = jax.block_until_ready(
                    self._fwd_fast(x, self._w_ke, self._bias2d))
                self._fwd = self._fwd_fast
                return out
            except Exception:
                self._fwd = self._fwd_safe
        return self._fwd(x, self._w_ke, self._bias2d)


def _reference(x, weight, bias):
    """Plain-JAX reference of the Conv3d patch projection (for sanity)."""
    B, C, T, H, W = x.shape
    E, _, tp, ph, pw = weight.shape
    Tp, Hp, Wp = T // tp, H // ph, W // pw
    xp = x.reshape(B, C, Tp, tp, Hp, ph, Wp, pw)
    xp = jnp.transpose(xp, (0, 2, 4, 6, 1, 3, 5, 7)).reshape(
        B, Tp, Hp, Wp, C * tp * ph * pw)
    y = jnp.einsum('bthwk,ek->bthwe', xp, weight.reshape(E, -1)) + bias
    return y.reshape(B, Tp, Hp * Wp, E)


if __name__ == "__main__":
    key = jax.random.PRNGKey(0)
    k_x, k_p = jax.random.split(key)

    # Small shapes: B=2, C=4, T=8, H=W=16, patch=8, t_patch=4, embed=32
    B, C, T, H, W = 2, 4, 8, 16, 16
    x = jax.random.normal(k_x, (B, C, T, H, W), dtype=jnp.float32)

    # f32 compute path: exact check against the plain-JAX reference.
    mod_f32 = PatchEmbed(img_size=16, patch_size=8, in_chans=C, embed_dim=32,
                         frames=T, t_patch_size=4, key=k_p,
                         compute_dtype=jnp.float32)
    out_f32 = jax.block_until_ready(mod_f32(x))
    ref = _reference(x, mod_f32.weight, mod_f32.bias)
    assert out_f32.shape == (B, 2, 4, 32), out_f32.shape
    assert jnp.allclose(out_f32, ref, atol=1e-4, rtol=1e-4)

    # Default bf16-compute path (MXU-friendly), f32 accumulation.
    mod_bf16 = PatchEmbed(img_size=16, patch_size=8, in_chans=C, embed_dim=32,
                          frames=T, t_patch_size=4, key=k_p)
    out_bf16 = jax.block_until_ready(mod_bf16(x))
    assert out_bf16.shape == (B, 2, 4, 32), out_bf16.shape
    assert jnp.allclose(out_bf16, ref, atol=3e-2, rtol=3e-2)

    print("KERNEL_OK")
</pallas_src>

<mosaic_0001>
module attributes {stable_mosaic.version = 11 : i64} {
  func.func @_patch_embed_kernel(%arg0: i32, %arg1: i32, %arg2: memref<8x1024xf32, #tpu.memory_space<vmem>>, %arg3: memref<1024x32xf32, #tpu.memory_space<vmem>>, %arg4: memref<1x32xf32, #tpu.memory_space<vmem>>, %arg5: memref<8x32xf32, #tpu.memory_space<vmem>>) attributes {dimension_semantics = [#tpu.dimension_semantics<parallel>, #tpu.dimension_semantics<parallel>], iteration_bounds = array<i64: 2, 1>, scalar_prefetch = 0 : i64, scratch_operands = 0 : i64, tpu.core_type = #tpu.core_type<tc>, window_params = [{transform_indices = @transform_0, window_bounds = array<i64: 8, 1024>}, {pipeline_mode = #tpu.pipeline_mode<synchronous>, transform_indices = @transform_1, window_bounds = array<i64: 1024, 32>}, {pipeline_mode = #tpu.pipeline_mode<synchronous>, transform_indices = @transform_2, window_bounds = array<i64: 1, 32>}, {transform_indices = @transform_3, window_bounds = array<i64: 8, 32>}]} {
    %c0 = arith.constant 0 : index
    %c0_0 = arith.constant 0 : index
    %0 = vector.load %arg2[%c0, %c0_0] : memref<8x1024xf32, #tpu.memory_space<vmem>>, vector<8x1024xf32>
    %c0_1 = arith.constant 0 : index
    %c0_2 = arith.constant 0 : index
    %1 = vector.load %arg3[%c0_1, %c0_2] : memref<1024x32xf32, #tpu.memory_space<vmem>>, vector<1024x32xf32>
    %cst = arith.constant dense<0.000000e+00> : vector<8x32xf32>
    %2 = tpu.matmul %0, %1, %cst {dimension_numbers = #tpu.dot_dimension_numbers<[1], [0], [0], [1], [0, 0, 1, 1], [], []>} : vector<8x1024xf32>, vector<1024x32xf32>, vector<8x32xf32> -> vector<8x32xf32>
    %c0_3 = arith.constant 0 : index
    %c0_4 = arith.constant 0 : index
    %3 = vector.load %arg4[%c0_3, %c0_4] : memref<1x32xf32, #tpu.memory_space<vmem>>, vector<1x32xf32>
    %4 = vector.broadcast %3 : vector<1x32xf32> to vector<8x32xf32>
    %5 = arith.addf %2, %4 : vector<8x32xf32>
    %c0_5 = arith.constant 0 : index
    %c0_6 = arith.constant 0 : index
    %6 = vector.load %arg5[%c0_5, %c0_6] : memref<8x32xf32, #tpu.memory_space<vmem>>, vector<8x32xf32>
    tpu.vector_store %arg5[%c0_5, %c0_6], %5 {strides = array<i32>} : memref<8x32xf32, #tpu.memory_space<vmem>>, vector<8x32xf32>,
    return
  }
  func.func @transform_0(%arg0: i32, %arg1: i32) -> (i32, i32) {
    %c0_i32 = arith.constant 0 : i32
    %c0_i32_0 = arith.constant 0 : i32
    return %arg0, %c0_i32 : i32, i32
  }
  func.func @transform_1(%arg0: i32, %arg1: i32) -> (i32, i32) {
    %c0_i32 = arith.constant 0 : i32
    %c0_i32_0 = arith.constant 0 : i32
    return %c0_i32, %arg1 : i32, i32
  }
  func.func @transform_2(%arg0: i32, %arg1: i32) -> (i32, i32) {
    %c0_i32 = arith.constant 0 : i32
    %c0_i32_0 = arith.constant 0 : i32
    return %c0_i32, %arg1 : i32, i32
  }
  func.func @transform_3(%arg0: i32, %arg1: i32) -> (i32, i32) {
    %c0_i32 = arith.constant 0 : i32
    return %arg0, %arg1 : i32, i32
  }
}

module attributes {stable_mosaic.version = 11 : i64} {
  func.func @_patch_embed_kernel(%arg0: i32, %arg1: i32, %arg2: memref<8x1024xf32, #tpu.memory_space<vmem>>, %arg3: memref<1024x32xf32, #tpu.memory_space<vmem>>, %arg4: memref<1x32xf32, #tpu.memory_space<vmem>>, %arg5: memref<8x32xf32, #tpu.memory_space<vmem>>) attributes {dimension_semantics = [#tpu.dimension_semantics<parallel>, #tpu.dimension_semantics<parallel>], iteration_bounds = array<i64: 2, 1>, scalar_prefetch = 0 : i64, scratch_operands = 0 : i64, tpu.core_type = #tpu.core_type<tc>, window_params = [{transform_indices = @transform_0, window_bounds = array<i64: 8, 1024>}, {transform_indices = @transform_1, window_bounds = array<i64: 1024, 32>}, {transform_indices = @transform_2, window_bounds = array<i64: 1, 32>}, {transform_indices = @transform_3, window_bounds = array<i64: 8, 32>}]} {
    %c0 = arith.constant 0 : index
    %c0_0 = arith.constant 0 : index
    %0 = vector.load %arg2[%c0, %c0_0] : memref<8x1024xf32, #tpu.memory_space<vmem>>, vector<8x1024xf32>
    %c0_1 = arith.constant 0 : index
    %c0_2 = arith.constant 0 : index
    %1 = vector.load %arg3[%c0_1, %c0_2] : memref<1024x32xf32, #tpu.memory_space<vmem>>, vector<1024x32xf32>
    %cst = arith.constant dense<0.000000e+00> : vector<8x32xf32>
    %2 = tpu.matmul %0, %1, %cst {dimension_numbers = #tpu.dot_dimension_numbers<[1], [0], [0], [1], [0, 0, 1, 1], [], []>} : vector<8x1024xf32>, vector<1024x32xf32>, vector<8x32xf32> -> vector<8x32xf32>
    %c0_3 = arith.constant 0 : index
    %c0_4 = arith.constant 0 : index
    %3 = vector.load %arg4[%c0_3, %c0_4] : memref<1x32xf32, #tpu.memory_space<vmem>>, vector<1x32xf32>
    %4 = vector.broadcast %3 : vector<1x32xf32> to vector<8x32xf32>
    %5 = arith.addf %2, %4 : vector<8x32xf32>
    %c0_5 = arith.constant 0 : index
    %c0_6 = arith.constant 0 : index
    %6 = vector.load %arg5[%c0_5, %c0_6] : memref<8x32xf32, #tpu.memory_space<vmem>>, vector<8x32xf32>
    tpu.vector_store %arg5[%c0_5, %c0_6], %5 {strides = array<i32>} : memref<8x32xf32, #tpu.memory_space<vmem>>, vector<8x32xf32>,
    return
  }
  func.func @transform_0(%arg0: i32, %arg1: i32) -> (i32, i32) {
    %c0_i32 = arith.constant 0 : i32
    %c0_i32_0 = arith.constant 0 : i32
    return %arg0, %c0_i32 : i32, i32
  }
  func.func @transform_1(%arg0: i32, %arg1: i32) -> (i32, i32) {
    %c0_i32 = arith.constant 0 : i32
    %c0_i32_0 = arith.constant 0 : i32
    return %c0_i32, %arg1 : i32, i32
  }
  func.func @transform_2(%arg0: i32, %arg1: i32) -> (i32, i32) {
    %c0_i32 = arith.constant 0 : i32
    %c0_i32_0 = arith.constant 0 : i32
    return %c0_i32, %arg1 : i32, i32
  }
  func.func @transform_3(%arg0: i32, %arg1: i32) -> (i32, i32) {
    %c0_i32 = arith.constant 0 : i32
    return %arg0, %arg1 : i32, i32
  }
}

</mosaic_0001>

<llo_original>
// kernel: patch_embed_forward.1
$region0: #{patch_embed_forward.1}
  #allocation0 [shape = 'u32[]', space=smem, size = 0x4, offset = 0x4, fixed_abs, tag = 'smem constant byte address 0x4 - core index']
  #allocation1 [shape = 'u32[144,128]{1,0:T(1,128)}', space=vmem, size = 0x12000, scoped, tag = 'internal scratch']
  %s0 = inlined_call_operand.vmem [shape: f32[16,1024], index: 0, kind: input, shape index: {}]
  %s1 = inlined_call_operand.vmem [shape: f32[1024,32], index: 1, kind: input, shape index: {}]
  %s2 = inlined_call_operand.vmem [shape: f32[1,32], index: 2, kind: input, shape index: {}]
  %s3 = inlined_call_operand.hbm [shape: f32[16,32], index: 3, kind: output, shape index: {}]
  %s4 = sld [smem:[#allocation0]]
  $region45: #{patch_embed_forward.1} parent=0
    _
  %s6 = ssub.s32 1, %s4
  %s7 = scalar_select 0, %s6, %s4
  $region1: #{patch_embed_forward.1} parent=0
    #allocation2 [shape = 'u8[8192]{0}', space=vmem, size = 0x2000, scoped, tag = 'output window, operand 0']
    #allocation3 [shape = 's32[2]{0}', space=sflag, size = 0x8, scoped, tag = 'scoped memory for patch_embed_forward.1']
    %8 = vsyncpa [#allocation3], 0
    %s9 = scalar_lea.sflag [#allocation3], 1
    %10 = vsyncpa %s9, 0
    loop: start=0, step=1, limit=4
    $region2: #{patch_embed_forward.1} parent=1 // loop_pre_header
      _
    $region3: #{patch_embed_forward.1} parent=1 // loop_header
      %s12 = sphi 0, %s16
      %p13 = scmp.ge.s32.totalorder %s12, 4
      %s19 = sphi 0, %s31
      %s20 = sphi 0, %s27
      %s21 = sphi 0, %s19
      %s22 = sphi 0, %s20
      %s23 = sphi 0, %s21
      %s24 = sphi 0, %s22
      %s34 = sphi 0, %s36
      %s37 = sphi 0, %s34
      %s38 = sphi 0, %s37
      %s54 = sphi 0, %s38
      %s60 = sphi 0, %s62
      %s63 = sphi 0, %s60
      %s64 = sphi 0, %s63
      %s80 = sphi 0, %s64
      %s86 = sphi 0, %s88
      %s89 = sphi 0, %s86
      %s90 = sphi 0, %s89
      %s106 = sphi 0, %s90
      %s114 = sphi 0, %s116
      %s117 = sphi 0, %s114
      %s118 = sphi 0, %s117
      %s134 = sphi 0, %s118
    $region4: #{patch_embed_forward.1} parent=1 // loop_header_branch
      %15 = sbr.rel (%p13) target = $region8
    $region5: #{patch_embed_forward.1} parent=1 // loop_body
      %s17 = ssub.s32 %s12, 1
      %s18 = ssub.s32 %s12, 2
      %s25 = sadd.s32 1, %s20
      %p26 = scmp.ge.s32.totalorder %s25, 1
      %s27 = scalar_select %p26, 0, %s25
      %s28 = sadd.s32 1, %s19
      %s29 = scalar_select %p26, %s28, %s19
      %p30 = scmp.ge.s32.totalorder %s29, 2
      %s31 = scalar_select %p30, 0, %s29
      %s32 = ssub.s32 %s19, %s31
      %p33 = scmp.eq.s32.totalorder %s32, 0
      %s35 = sadd.s32 %s34, 1
      %s36 = scalar_select %p33, %s34, %s35
      %p39 = pneg %p33
      %p40 = scmp.eq.s32.totalorder %s12, 1
      %p41 = por %p39, %p40
      %p42 = scmp.ne.s32.totalorder %s34, %s37
      %p43 = scmp.eq.s32.totalorder %s12, 0
      %p44 = por %p42, %p43
      %p45 = scmp.ne.s32.totalorder %s34, %s37
      %p46 = scmp.eq.s32.totalorder %s17, 1
      %p47 = por %p45, %p46
      %p48 = scmp.ne.s32.totalorder %s37, %s38
      %p49 = scmp.eq.s32.totalorder %s17, 0
      %p50 = por %p48, %p49
      %p51 = scmp.ne.s32.totalorder %s37, %s38
      %p52 = scmp.eq.s32.totalorder %s18, 1
      %p53 = por %p51, %p52
      %p55 = scmp.ne.s32.totalorder %s38, %s54
      %p56 = scmp.eq.s32.totalorder %s18, 0
      %p57 = por %p55, %p56
      %s58 = ssub.s32 %s20, %s27
      %p59 = scmp.eq.s32.totalorder %s58, 0
      %s61 = sadd.s32 %s60, 1
      %s62 = scalar_select %p59, %s60, %s61
      %p65 = pneg %p59
      %p66 = scmp.eq.s32.totalorder %s12, 1
      %p67 = por %p65, %p66
      %p68 = scmp.ne.s32.totalorder %s60, %s63
      %p69 = scmp.eq.s32.totalorder %s12, 0
      %p70 = por %p68, %p69
      %p71 = scmp.ne.s32.totalorder %s60, %s63
      %p72 = scmp.eq.s32.totalorder %s17, 1
      %p73 = por %p71, %p72
      %p74 = scmp.ne.s32.totalorder %s63, %s64
      %p75 = scmp.eq.s32.totalorder %s17, 0
      %p76 = por %p74, %p75
      %p77 = scmp.ne.s32.totalorder %s63, %s64
      %p78 = scmp.eq.s32.totalorder %s18, 1
      %p79 = por %p77, %p78
      %p81 = scmp.ne.s32.totalorder %s64, %s80
      %p82 = scmp.eq.s32.totalorder %s18, 0
      %p83 = por %p81, %p82
      %s84 = ssub.s32 %s20, %s27
      %p85 = scmp.eq.s32.totalorder %s84, 0
      %s87 = sadd.s32 %s86, 1
      %s88 = scalar_select %p85, %s86, %s87
      %p91 = pneg %p85
      %p92 = scmp.eq.s32.totalorder %s12, 1
      %p93 = por %p91, %p92
      %p94 = scmp.ne.s32.totalorder %s86, %s89
      %p95 = scmp.eq.s32.totalorder %s12, 0
      %p96 = por %p94, %p95
      %p97 = scmp.ne.s32.totalorder %s86, %s89
      %p98 = scmp.eq.s32.totalorder %s17, 1
      %p99 = por %p97, %p98
      %p100 = scmp.ne.s32.totalorder %s89, %s90
      %p101 = scmp.eq.s32.totalorder %s17, 0
      %p102 = por %p100, %p101
      %p103 = scmp.ne.s32.totalorder %s89, %s90
      %p104 = scmp.eq.s32.totalorder %s18, 1
      %p105 = por %p103, %p104
      %p107 = scmp.ne.s32.totalorder %s90, %s106
      %p108 = scmp.eq.s32.totalorder %s18, 0
      %p109 = por %p107, %p108
      %s110 = ssub.s32 %s19, %s31
      %s111 = ssub.s32 %s20, %s27
      %s112 = sor.u32 %s110, %s111
      %p113 = scmp.eq.s32.totalorder %s112, 0
      %s115 = sadd.s32 %s114, 1
      %s116 = scalar_select %p113, %s114, %s115
      %p119 = pneg %p113
      %p120 = scmp.eq.s32.totalorder %s12, 1
      %p121 = por %p119, %p120
      %p122 = scmp.ne.s32.totalorder %s114, %s117
      %p123 = scmp.eq.s32.totalorder %s12, 0
      %p124 = por %p122, %p123
      %p125 = scmp.ne.s32.totalorder %s114, %s117
      %p126 = scmp.eq.s32.totalorder %s17, 1
      %p127 = por %p125, %p126
      %p128 = scmp.ne.s32.totalorder %s117, %s118
      %p129 = scmp.eq.s32.totalorder %s17, 0
      %p130 = por %p128, %p129
      %p131 = scmp.ne.s32.totalorder %s117, %s118
      %p132 = scmp.eq.s32.totalorder %s18, 1
      %p133 = por %p131, %p132
      %p135 = scmp.ne.s32.totalorder %s118, %s134
      %p136 = scmp.eq.s32.totalorder %s18, 0
      %p137 = por %p135, %p136
      %p138 = scmp.le.s32.totalorder 1, %s12
      %p139 = scmp.lt.s32.totalorder %s12, 3
      %p140 = pnand %p138, %p139
      %p141 = pneg %p140
      // Predicated region
      $region9: #{patch_embed_forward.1} parent=5 // pred_check
        _
      $region10: #{patch_embed_forward.1} parent=5 // pred_check_branch
        %143 = sbr.rel (%p140) target = $region12
      $region11: #{patch_embed_forward.1} parent=5 // pred_region
        %s144 = ssub.s32 %s12, 1
        // Predicated region
        $region13: #{patch_embed_forward.1} parent=11 // pred_check
          %p145 = pneg %p76
        $region14: #{patch_embed_forward.1} parent=11 // pred_check_branch
          %147 = sbr.rel (%p145) target = $region16
        $region15: #{patch_embed_forward.1} parent=11 // pred_region
          %p148 = scmp.lt.s32.totalorder %s22, 0
          %s149 = scalar_select %p148, %s22, 0
          %s150 = smul.addr %s149, 8
          %s151 = scalar_lea.vmem %s1, %s150
        $region16: #{patch_embed_forward.1} parent=11 // pred_fallthru
          _
        // Predicated region
        $region17: #{patch_embed_forward.1} parent=11 // pred_check
          %p152 = pneg %p102
        $region18: #{patch_embed_forward.1} parent=11 // pred_check_branch
          %154 = sbr.rel (%p152) target = $region20
        $region19: #{patch_embed_forward.1} parent=11 // pred_region
          %p155 = scmp.lt.s32.totalorder %s22, 0
          %s156 = scalar_select %p155, %s22, 0
          %s157 = scalar_lea.vmem %s2, %s156
        $region20: #{patch_embed_forward.1} parent=11 // pred_fallthru
          _
      $region12: #{patch_embed_forward.1} parent=5 // pred_fallthru
        _
      %p158 = scmp.lt.s32.totalorder %s12, 2
      // Predicated region
      $region21: #{patch_embed_forward.1} parent=5 // pred_check
        %p159 = pneg %p158
      $region22: #{patch_embed_forward.1} parent=5 // pred_check_branch
        %161 = sbr.rel (%p159) target = $region24
      $region23: #{patch_embed_forward.1} parent=5 // pred_region
        // Predicated region
        $region25: #{patch_embed_forward.1} parent=23 // pred_check
          %p162 = pneg %p44
        $region26: #{patch_embed_forward.1} parent=23 // pred_check_branch
          %164 = sbr.rel (%p162) target = $region28
        $region27: #{patch_embed_forward.1} parent=23 // pred_region
          %p165 = scmp.lt.s32.totalorder %s19, 1
          %s166 = scalar_select %p165, %s19, 1
          %s167 = smul.addr %s166, 8
          %s168 = smul.addr %s167, 8
          %s169 = scalar_lea.vmem %s0, %s168
        $region28: #{patch_embed_forward.1} parent=23 // pred_fallthru
          _
      $region24: #{patch_embed_forward.1} parent=5 // pred_fallthru
        _
      %p170 = scmp.le.s32.totalorder 1, %s12
      %p171 = scmp.lt.s32.totalorder %s12, 3
      %p172 = pnand %p170, %p171
      %p173 = pneg %p172
      // Predicated region
      $region29: #{patch_embed_forward.1} parent=5 // pred_check
        _
      $region30: #{patch_embed_forward.1} parent=5 // pred_check_branch
        %175 = sbr.rel (%p172) target = $region32
      $region31: #{patch_embed_forward.1} parent=5 // pred_region
        %s176 = ssub.s32 %s12, 1
        %p177 = scmp.lt.s32.totalorder %s21, 1
        %s178 = scalar_select %p177, %s21, 1
        %s179 = smul.addr %s178, 8
        %s180 = smul.addr %s179, 8
        %s181 = scalar_lea.vmem %s0, %s180
        %p182 = pneg %p50
        %p183 = pneg %p47
        %p184 = scmp.lt.s32.totalorder %s22, 0
        %s185 = scalar_select %p184, %s22, 0
        %s186 = smul.addr %s185, 8
        %s187 = scalar_lea.vmem %s1, %s186
        %p188 = pneg %p76
        %p189 = pneg %p73
        %p190 = scmp.lt.s32.totalorder %s22, 0
        %s191 = scalar_select %p190, %s22, 0
        %s192 = scalar_lea.vmem %s2, %s191
        %p193 = pneg %p102
        %p194 = pneg %p99
        %p195 = pneg %p130
        %p196 = pneg %p127
        %s197 = sand.u32 %s117, 1
        %s198 = scalar_lea.sflag [#allocation3], %s197
        %s199 = sand.u32 %s117, 1
        %s200 = smul.addr %s199, 8
        %s201 = scalar_lea.vmem [#allocation2], %s200
        %p202 = scmp.lt.s32.totalorder %s21, 1
        %s203 = scalar_select %p202, %s21, 1
        %s204 = smul.addr %s203, 8
        %s205 = smul.addr %s204, 8
        %s206 = scalar_lea.vmem %s0, %s205
        %p207 = scmp.lt.s32.totalorder %s22, 0
        %s208 = scalar_select %p207, %s22, 0
        %s209 = smul.addr %s208, 8
        %s210 = scalar_lea.vmem %s1, %s209
        %p211 = scmp.lt.s32.totalorder %s22, 0
        %s212 = scalar_select %p211, %s22, 0
        %s213 = scalar_lea.vmem %s2, %s212
        %v214 = vld [vmem:[%s206] sm:$0xff]
        %v215 = vld [vmem:[%s206 + $0x8] sm:$0xff]
        %v216 = vld [vmem:[%s206 + $0x10] sm:$0xff]
        %v217 = vld [vmem:[%s206 + $0x18] sm:$0xff]
        %v218 = vld [vmem:[%s206 + $0x20] sm:$0xff]
        %v219 = vld [vmem:[%s206 + $0x28] sm:$0xff]
        %v220 = vld [vmem:[%s206 + $0x30] sm:$0xff]
        %v221 = vld [vmem:[%s206 + $0x38] sm:$0xff]
        %v222 = vld [vmem:[%s210] sm:$0xff]
        %v223 = vld [vmem:[%s210 + $0x8] sm:$0xff]
        %v224 = vld [vmem:[%s210 + $0x10] sm:$0xff]
        %v225 = vld [vmem:[%s210 + $0x18] sm:$0xff]
        %v226 = vld [vmem:[%s210 + $0x20] sm:$0xff]
        %v227 = vld [vmem:[%s210 + $0x28] sm:$0xff]
        %v228 = vld [vmem:[%s210 + $0x30] sm:$0xff]
        %v229 = vld [vmem:[%s210 + $0x38] sm:$0xff]
        %v230 = vld [vmem:[%s210 + $0x40] sm:$0xff]
        %v231 = vld [vmem:[%s210 + $0x48] sm:$0xff]
        %v232 = vld [vmem:[%s210 + $0x50] sm:$0xff]
        %v233 = vld [vmem:[%s210 + $0x58] sm:$0xff]
        %v234 = vld [vmem:[%s210 + $0x60] sm:$0xff]
        %v235 = vld [vmem:[%s210 + $0x68] sm:$0xff]
        %v236 = vld [vmem:[%s210 + $0x70] sm:$0xff]
        %v237 = vld [vmem:[%s210 + $0x78] sm:$0xff]
        %v238 = vld [vmem:[%s210 + $0x80] sm:$0xff]
        %v239 = vld [vmem:[%s210 + $0x88] sm:$0xff]
        %v240 = vld [vmem:[%s210 + $0x90] sm:$0xff]
        %v241 = vld [vmem:[%s210 + $0x98] sm:$0xff]
        %v242 = vld [vmem:[%s210 + $0xa0] sm:$0xff]
        %v243 = vld [vmem:[%s210 + $0xa8] sm:$0xff]
        %v244 = vld [vmem:[%s210 + $0xb0] sm:$0xff]
        %v245 = vld [vmem:[%s210 + $0xb8] sm:$0xff]
        %v246 = vld [vmem:[%s210 + $0xc0] sm:$0xff]
        %v247 = vld [vmem:[%s210 + $0xc8] sm:$0xff]
        %v248 = vld [vmem:[%s210 + $0xd0] sm:$0xff]
        %v249 = vld [vmem:[%s210 + $0xd8] sm:$0xff]
        %v250 = vld [vmem:[%s210 + $0xe0] sm:$0xff]
        %v251 = vld [vmem:[%s210 + $0xe8] sm:$0xff]
        %v252 = vld [vmem:[%s210 + $0xf0] sm:$0xff]
        %v253 = vld [vmem:[%s210 + $0xf8] sm:$0xff]
        %v254 = vld [vmem:[%s210 + $0x100] sm:$0xff]
        %v255 = vld [vmem:[%s210 + $0x108] sm:$0xff]
        %v256 = vld [vmem:[%s210 + $0x110] sm:$0xff]
        %v257 = vld [vmem:[%s210 + $0x118] sm:$0xff]
        %v258 = vld [vmem:[%s210 + $0x120] sm:$0xff]
        %v259 = vld [vmem:[%s210 + $0x128] sm:$0xff]
        %v260 = vld [vmem:[%s210 + $0x130] sm:$0xff]
        %v261 = vld [vmem:[%s210 + $0x138] sm:$0xff]
        %v262 = vld [vmem:[%s210 + $0x140] sm:$0xff]
        %v263 = vld [vmem:[%s210 + $0x148] sm:$0xff]
        %v264 = vld [vmem:[%s210 + $0x150] sm:$0xff]
        %v265 = vld [vmem:[%s210 + $0x158] sm:$0xff]
        %v266 = vld [vmem:[%s210 + $0x160] sm:$0xff]
        %v267 = vld [vmem:[%s210 + $0x168] sm:$0xff]
        %v268 = vld [vmem:[%s210 + $0x170] sm:$0xff]
        %v269 = vld [vmem:[%s210 + $0x178] sm:$0xff]
        %v270 = vld [vmem:[%s210 + $0x180] sm:$0xff]
        %v271 = vld [vmem:[%s210 + $0x188] sm:$0xff]
        %v272 = vld [vmem:[%s210 + $0x190] sm:$0xff]
        %v273 = vld [vmem:[%s210 + $0x198] sm:$0xff]
        %v274 = vld [vmem:[%s210 + $0x1a0] sm:$0xff]
        %v275 = vld [vmem:[%s210 + $0x1a8] sm:$0xff]
        %v276 = vld [vmem:[%s210 + $0x1b0] sm:$0xff]
        %v277 = vld [vmem:[%s210 + $0x1b8] sm:$0xff]
        %v278 = vld [vmem:[%s210 + $0x1c0] sm:$0xff]
        %v279 = vld [vmem:[%s210 + $0x1c8] sm:$0xff]
        %v280 = vld [vmem:[%s210 + $0x1d0] sm:$0xff]
        %v281 = vld [vmem:[%s210 + $0x1d8] sm:$0xff]
        %v282 = vld [vmem:[%s210 + $0x1e0] sm:$0xff]
        %v283 = vld [vmem:[%s210 + $0x1e8] sm:$0xff]
        %v284 = vld [vmem:[%s210 + $0x1f0] sm:$0xff]
        %v285 = vld [vmem:[%s210 + $0x1f8] sm:$0xff]
        %v286 = vld [vmem:[%s210 + $0x200] sm:$0xff]
        %v287 = vld [vmem:[%s210 + $0x208] sm:$0xff]
        %v288 = vld [vmem:[%s210 + $0x210] sm:$0xff]
        %v289 = vld [vmem:[%s210 + $0x218] sm:$0xff]
        %v290 = vld [vmem:[%s210 + $0x220] sm:$0xff]
        %v291 = vld [vmem:[%s210 + $0x228] sm:$0xff]
        %v292 = vld [vmem:[%s210 + $0x230] sm:$0xff]
        %v293 = vld [vmem:[%s210 + $0x238] sm:$0xff]
        %v294 = vld [vmem:[%s210 + $0x240] sm:$0xff]
        %v295 = vld [vmem:[%s210 + $0x248] sm:$0xff]
        %v296 = vld [vmem:[%s210 + $0x250] sm:$0xff]
        %v297 = vld [vmem:[%s210 + $0x258] sm:$0xff]
        %v298 = vld [vmem:[%s210 + $0x260] sm:$0xff]
        %v299 = vld [vmem:[%s210 + $0x268] sm:$0xff]
        %v300 = vld [vmem:[%s210 + $0x270] sm:$0xff]
        %v301 = vld [vmem:[%s210 + $0x278] sm:$0xff]
        %v302 = vld [vmem:[%s210 + $0x280] sm:$0xff]
        %v303 = vld [vmem:[%s210 + $0x288] sm:$0xff]
        %v304 = vld [vmem:[%s210 + $0x290] sm:$0xff]
        %v305 = vld [vmem:[%s210 + $0x298] sm:$0xff]
        %v306 = vld [vmem:[%s210 + $0x2a0] sm:$0xff]
        %v307 = vld [vmem:[%s210 + $0x2a8] sm:$0xff]
        %v308 = vld [vmem:[%s210 + $0x2b0] sm:$0xff]
        %v309 = vld [vmem:[%s210 + $0x2b8] sm:$0xff]
        %v310 = vld [vmem:[%s210 + $0x2c0] sm:$0xff]
        %v311 = vld [vmem:[%s210 + $0x2c8] sm:$0xff]
        %v312 = vld [vmem:[%s210 + $0x2d0] sm:$0xff]
        %v313 = vld [vmem:[%s210 + $0x2d8] sm:$0xff]
        %v314 = vld [vmem:[%s210 + $0x2e0] sm:$0xff]
        %v315 = vld [vmem:[%s210 + $0x2e8] sm:$0xff]
        %v316 = vld [vmem:[%s210 + $0x2f0] sm:$0xff]
        %v317 = vld [vmem:[%s210 + $0x2f8] sm:$0xff]
        %v318 = vld [vmem:[%s210 + $0x300] sm:$0xff]
        %v319 = vld [vmem:[%s210 + $0x308] sm:$0xff]
        %v320 = vld [vmem:[%s210 + $0x310] sm:$0xff]
        %v321 = vld [vmem:[%s210 + $0x318] sm:$0xff]
        %v322 = vld [vmem:[%s210 + $0x320] sm:$0xff]
        %v323 = vld [vmem:[%s210 + $0x328] sm:$0xff]
        %v324 = vld [vmem:[%s210 + $0x330] sm:$0xff]
        %v325 = vld [vmem:[%s210 + $0x338] sm:$0xff]
        %v326 = vld [vmem:[%s210 + $0x340] sm:$0xff]
        %v327 = vld [vmem:[%s210 + $0x348] sm:$0xff]
        %v328 = vld [vmem:[%s210 + $0x350] sm:$0xff]
        %v329 = vld [vmem:[%s210 + $0x358] sm:$0xff]
        %v330 = vld [vmem:[%s210 + $0x360] sm:$0xff]
        %v331 = vld [vmem:[%s210 + $0x368] sm:$0xff]
        %v332 = vld [vmem:[%s210 + $0x370] sm:$0xff]
        %v333 = vld [vmem:[%s210 + $0x378] sm:$0xff]
        %v334 = vld [vmem:[%s210 + $0x380] sm:$0xff]
        %v335 = vld [vmem:[%s210 + $0x388] sm:$0xff]
        %v336 = vld [vmem:[%s210 + $0x390] sm:$0xff]
        %v337 = vld [vmem:[%s210 + $0x398] sm:$0xff]
        %v338 = vld [vmem:[%s210 + $0x3a0] sm:$0xff]
        %v339 = vld [vmem:[%s210 + $0x3a8] sm:$0xff]
        %v340 = vld [vmem:[%s210 + $0x3b0] sm:$0xff]
        %v341 = vld [vmem:[%s210 + $0x3b8] sm:$0xff]
        %v342 = vld [vmem:[%s210 + $0x3c0] sm:$0xff]
        %v343 = vld [vmem:[%s210 + $0x3c8] sm:$0xff]
        %v344 = vld [vmem:[%s210 + $0x3d0] sm:$0xff]
        %v345 = vld [vmem:[%s210 + $0x3d8] sm:$0xff]
        %v346 = vld [vmem:[%s210 + $0x3e0] sm:$0xff]
        %v347 = vld [vmem:[%s210 + $0x3e8] sm:$0xff]
        %v348 = vld [vmem:[%s210 + $0x3f0] sm:$0xff]
        %v349 = vld [vmem:[%s210 + $0x3f8] sm:$0xff]
        %v350 = vld [vmem:[%s213] sm:$0x1]
        %v352 = vlaneseq
        %v353 = vshrl.u32 %v352, 7
        %v354 = vsub.s32 0, %v353
        %v355 = vrot.slane %v350, %v354
        %357 = vmatprep.subr.mxu0 0.0
        %358 = vmatpush1.msra.mxu0 %v222
        %359 = vmatprep.subr.mxu0 0.0
        %360 = vmatpush1.msra.mxu0 %v223
        %361 = vmatprep.subr.mxu0 0.0
        %362 = vmatpush1.msra.mxu0 %v224
        %363 = vmatprep.subr.mxu0 0.0
        %364 = vmatpush1.msra.mxu0 %v225
        %365 = vmatprep.subr.mxu0 0.0
        %366 = vmatpush1.msra.mxu0 %v226
        %367 = vmatprep.subr.mxu0 0.0
        %368 = vmatpush1.msra.mxu0 %v227
        %369 = vmatprep.subr.mxu0 0.0
        %370 = vmatpush1.msra.mxu0 %v228
        %371 = vmatprep.subr.mxu0 0.0
        %372 = vmatpush1.msra.mxu0 %v229
        %373 = vmatprep.subr.mxu0 0.0
        %374 = vmatpush1.msra.mxu0 %v230
        %375 = vmatprep.subr.mxu0 0.0
        %376 = vmatpush1.msra.mxu0 %v231
        %377 = vmatprep.subr.mxu0 0.0
        %378 = vmatpush1.msra.mxu0 %v232
        %379 = vmatprep.subr.mxu0 0.0
        %380 = vmatpush1.msra.mxu0 %v233
        %381 = vmatprep.subr.mxu0 0.0
        %382 = vmatpush1.msra.mxu0 %v234
        %383 = vmatprep.subr.mxu0 0.0
        %384 = vmatpush1.msra.mxu0 %v235
        %385 = vmatprep.subr.mxu0 0.0
        %386 = vmatpush1.msra.mxu0 %v236
        %387 = vmatprep.subr.mxu0 0.0
        %388 = vmatpush1.msra.mxu0 %v237
        %389 = vmatprep.subr.mxu0 0.0
        %390 = vmatpush1.msra.mxu0 %v238
        %391 = vmatprep.subr.mxu0 0.0
        %392 = vmatpush1.msra.mxu0 %v239
        %393 = vmatprep.subr.mxu0 0.0
        %394 = vmatpush1.msra.mxu0 %v240
        %395 = vmatprep.subr.mxu0 0.0
        %396 = vmatpush1.msra.mxu0 %v241
        %397 = vmatprep.subr.mxu0 0.0
        %398 = vmatpush1.msra.mxu0 %v242
        %399 = vmatprep.subr.mxu0 0.0
        %400 = vmatpush1.msra.mxu0 %v243
        %401 = vmatprep.subr.mxu0 0.0
        %402 = vmatpush1.msra.mxu0 %v244
        %403 = vmatprep.subr.mxu0 0.0
        %404 = vmatpush1.msra.mxu0 %v245
        %405 = vmatprep.subr.mxu0 0.0
        %406 = vmatpush1.msra.mxu0 %v246
        %407 = vmatprep.subr.mxu0 0.0
        %408 = vmatpush1.msra.mxu0 %v247
        %409 = vmatprep.subr.mxu0 0.0
        %410 = vmatpush1.msra.mxu0 %v248
        %411 = vmatprep.subr.mxu0 0.0
        %412 = vmatpush1.msra.mxu0 %v249
        %413 = vmatprep.subr.mxu0 0.0
        %414 = vmatpush1.msra.mxu0 %v250
        %415 = vmatprep.subr.mxu0 0.0
        %416 = vmatpush1.msra.mxu0 %v251
        %417 = vmatprep.subr.mxu0 0.0
        %418 = vmatpush1.msra.mxu0 %v252
        %419 = vmatprep.subr.mxu0 0.0
        %420 = vmatpush1.msra.mxu0 %v253
        %421 = vmatprep.mubr.f32.mxu0 %v215
        %422 = vmatmul.mubr.f32.gmra.mrb[0].mxu0 %v214
        %v423 = vpop.f32.mrb[0].mxu0
        %v424 = vadd.f32 %v355, %v423
        %v425 = vpop.f32.mrb[0].mxu0
        %426 = vdwg.mxu0
        %427 = vmatprep.subr.mxu0 0.0
        %428 = vmatpush1.msra.mxu0 %v254
        %429 = vmatprep.subr.mxu0 0.0
        %430 = vmatpush1.msra.mxu0 %v255
        %431 = vmatprep.subr.mxu0 0.0
        %432 = vmatpush1.msra.mxu0 %v256
        %433 = vmatprep.subr.mxu0 0.0
        %434 = vmatpush1.msra.mxu0 %v257
        %435 = vmatprep.subr.mxu0 0.0
        %436 = vmatpush1.msra.mxu0 %v258
        %437 = vmatprep.subr.mxu0 0.0
        %438 = vmatpush1.msra.mxu0 %v259
        %439 = vmatprep.subr.mxu0 0.0
        %440 = vmatpush1.msra.mxu0 %v260
        %441 = vmatprep.subr.mxu0 0.0
        %442 = vmatpush1.msra.mxu0 %v261
        %443 = vmatprep.subr.mxu0 0.0
        %444 = vmatpush1.msra.mxu0 %v262
        %445 = vmatprep.subr.mxu0 0.0
        %446 = vmatpush1.msra.mxu0 %v263
        %447 = vmatprep.subr.mxu0 0.0
        %448 = vmatpush1.msra.mxu0 %v264
        %449 = vmatprep.subr.mxu0 0.0
        %450 = vmatpush1.msra.mxu0 %v265
        %451 = vmatprep.subr.mxu0 0.0
        %452 = vmatpush1.msra.mxu0 %v266
        %453 = vmatprep.subr.mxu0 0.0
        %454 = vmatpush1.msra.mxu0 %v267
        %455 = vmatprep.subr.mxu0 0.0
        %456 = vmatpush1.msra.mxu0 %v268
        %457 = vmatprep.subr.mxu0 0.0
        %458 = vmatpush1.msra.mxu0 %v269
        %459 = vmatprep.subr.mxu0 0.0
        %460 = vmatpush1.msra.mxu0 %v270
        %461 = vmatprep.subr.mxu0 0.0
        %462 = vmatpush1.msra.mxu0 %v271
        %463 = vmatprep.subr.mxu0 0.0
        %464 = vmatpush1.msra.mxu0 %v272
        %465 = vmatprep.subr.mxu0 0.0
        %466 = vmatpush1.msra.mxu0 %v273
        %467 = vmatprep.subr.mxu0 0.0
        %468 = vmatpush1.msra.mxu0 %v274
        %469 = vmatprep.subr.mxu0 0.0
        %470 = vmatpush1.msra.mxu0 %v275
        %471 = vmatprep.subr.mxu0 0.0
        %472 = vmatpush1.msra.mxu0 %v276
        %473 = vmatprep.subr.mxu0 0.0
        %474 = vmatpush1.msra.mxu0 %v277
        %475 = vmatprep.subr.mxu0 0.0
        %476 = vmatpush1.msra.mxu0 %v278
        %477 = vmatprep.subr.mxu0 0.0
        %478 = vmatpush1.msra.mxu0 %v279
        %479 = vmatprep.subr.mxu0 0.0
        %480 = vmatpush1.msra.mxu0 %v280
        %481 = vmatprep.subr.mxu0 0.0
        %482 = vmatpush1.msra.mxu0 %v281
        %483 = vmatprep.subr.mxu0 0.0
        %484 = vmatpush1.msra.mxu0 %v282
        %485 = vmatprep.subr.mxu0 0.0
        %486 = vmatpush1.msra.mxu0 %v283
        %487 = vmatprep.subr.mxu0 0.0
        %488 = vmatpush1.msra.mxu0 %v284
        %489 = vmatprep.subr.mxu0 0.0
        %490 = vmatpush1.msra.mxu0 %v285
        %491 = vmatprep.mubr.f32.mxu0 %v217
        %492 = vmatmul.mubr.f32.gmra.mrb[0].mxu0 %v216
        %v493 = vpop.f32.mrb[0].mxu0
        %v494 = vadd.f32 %v424, %v493
        %v495 = vpop.f32.mrb[0].mxu0
        %496 = vdwg.mxu0
        %497 = vmatprep.subr.mxu0 0.0
        %498 = vmatpush1.msra.mxu0 %v286
        %499 = vmatprep.subr.mxu0 0.0
        %500 = vmatpush1.msra.mxu0 %v287
        %501 = vmatprep.subr.mxu0 0.0
        %502 = vmatpush1.msra.mxu0 %v288
        %503 = vmatprep.subr.mxu0 0.0
        %504 = vmatpush1.msra.mxu0 %v289
        %505 = vmatprep.subr.mxu0 0.0
        %506 = vmatpush1.msra.mxu0 %v290
        %507 = vmatprep.subr.mxu0 0.0
        %508 = vmatpush1.msra.mxu0 %v291
        %509 = vmatprep.subr.mxu0 0.0
        %510 = vmatpush1.msra.mxu0 %v292
        %511 = vmatprep.subr.mxu0 0.0
        %512 = vmatpush1.msra.mxu0 %v293
        %513 = vmatprep.subr.mxu0 0.0
        %514 = vmatpush1.msra.mxu0 %v294
        %515 = vmatprep.subr.mxu0 0.0
        %516 = vmatpush1.msra.mxu0 %v295
        %517 = vmatprep.subr.mxu0 0.0
        %518 = vmatpush1.msra.mxu0 %v296
        %519 = vmatprep.subr.mxu0 0.0
        %520 = vmatpush1.msra.mxu0 %v297
        %521 = vmatprep.subr.mxu0 0.0
        %522 = vmatpush1.msra.mxu0 %v298
        %523 = vmatprep.subr.mxu0 0.0
        %524 = vmatpush1.msra.mxu0 %v299
        %525 = vmatprep.subr.mxu0 0.0
        %526 = vmatpush1.msra.mxu0 %v300
        %527 = vmatprep.subr.mxu0 0.0
        %528 = vmatpush1.msra.mxu0 %v301
        %529 = vmatprep.subr.mxu0 0.0
        %530 = vmatpush1.msra.mxu0 %v302
        %531 = vmatprep.subr.mxu0 0.0
        %532 = vmatpush1.msra.mxu0 %v303
        %533 = vmatprep.subr.mxu0 0.0
        %534 = vmatpush1.msra.mxu0 %v304
        %535 = vmatprep.subr.mxu0 0.0
        %536 = vmatpush1.msra.mxu0 %v305
        %537 = vmatprep.subr.mxu0 0.0
        %538 = vmatpush1.msra.mxu0 %v306
        %539 = vmatprep.subr.mxu0 0.0
        %540 = vmatpush1.msra.mxu0 %v307
        %541 = vmatprep.subr.mxu0 0.0
        %542 = vmatpush1.msra.mxu0 %v308
        %543 = vmatprep.subr.mxu0 0.0
        %544 = vmatpush1.msra.mxu0 %v309
        %545 = vmatprep.subr.mxu0 0.0
        %546 = vmatpush1.msra.mxu0 %v310
        %547 = vmatprep.subr.mxu0 0.0
        %548 = vmatpush1.msra.mxu0 %v311
        %549 = vmatprep.subr.mxu0 0.0
        %550 = vmatpush1.msra.mxu0 %v312
        %551 = vmatprep.subr.mxu0 0.0
        %552 = vmatpush1.msra.mxu0 %v313
        %553 = vmatprep.subr.mxu0 0.0
        %554 = vmatpush1.msra.mxu0 %v314
        %555 = vmatprep.subr.mxu0 0.0
        %556 = vmatpush1.msra.mxu0 %v315
        %557 = vmatprep.subr.mxu0 0.0
        %558 = vmatpush1.msra.mxu0 %v316
        %559 = vmatprep.subr.mxu0 0.0
        %560 = vmatpush1.msra.mxu0 %v317
        %561 = vmatprep.mubr.f32.mxu0 %v219
        %562 = vmatmul.mubr.f32.gmra.mrb[0].mxu0 %v218
        %v563 = vpop.f32.mrb[0].mxu0
        %v564 = vadd.f32 %v494, %v563
        %v565 = vpop.f32.mrb[0].mxu0
        %566 = vdwg.mxu0
        %567 = vmatprep.subr.mxu0 0.0
        %568 = vmatpush1.msra.mxu0 %v318
        %569 = vmatprep.subr.mxu0 0.0
        %570 = vmatpush1.msra.mxu0 %v319
        %571 = vmatprep.subr.mxu0 0.0
        %572 = vmatpush1.msra.mxu0 %v320
        %573 = vmatprep.subr.mxu0 0.0
        %574 = vmatpush1.msra.mxu0 %v321
        %575 = vmatprep.subr.mxu0 0.0
        %576 = vmatpush1.msra.mxu0 %v322
        %577 = vmatprep.subr.mxu0 0.0
        %578 = vmatpush1.msra.mxu0 %v323
        %579 = vmatprep.subr.mxu0 0.0
        %580 = vmatpush1.msra.mxu0 %v324
        %581 = vmatprep.subr.mxu0 0.0
        %582 = vmatpush1.msra.mxu0 %v325
        %583 = vmatprep.subr.mxu0 0.0
        %584 = vmatpush1.msra.mxu0 %v326
        %585 = vmatprep.subr.mxu0 0.0
        %586 = vmatpush1.msra.mxu0 %v327
        %587 = vmatprep.subr.mxu0 0.0
        %588 = vmatpush1.msra.mxu0 %v328
        %589 = vmatprep.subr.mxu0 0.0
        %590 = vmatpush1.msra.mxu0 %v329
        %591 = vmatprep.subr.mxu0 0.0
        %592 = vmatpush1.msra.mxu0 %v330
        %593 = vmatprep.subr.mxu0 0.0
        %594 = vmatpush1.msra.mxu0 %v331
        %595 = vmatprep.subr.mxu0 0.0
        %596 = vmatpush1.msra.mxu0 %v332
        %597 = vmatprep.subr.mxu0 0.0
        %598 = vmatpush1.msra.mxu0 %v333
        %599 = vmatprep.subr.mxu0 0.0
        %600 = vmatpush1.msra.mxu0 %v334
        %601 = vmatprep.subr.mxu0 0.0
        %602 = vmatpush1.msra.mxu0 %v335
        %603 = vmatprep.subr.mxu0 0.0
        %604 = vmatpush1.msra.mxu0 %v336
        %605 = vmatprep.subr.mxu0 0.0
        %606 = vmatpush1.msra.mxu0 %v337
        %607 = vmatprep.subr.mxu0 0.0
        %608 = vmatpush1.msra.mxu0 %v338
        %609 = vmatprep.subr.mxu0 0.0
        %610 = vmatpush1.msra.mxu0 %v339
        %611 = vmatprep.subr.mxu0 0.0
        %612 = vmatpush1.msra.mxu0 %v340
        %613 = vmatprep.subr.mxu0 0.0
        %614 = vmatpush1.msra.mxu0 %v341
        %615 = vmatprep.subr.mxu0 0.0
        %616 = vmatpush1.msra.mxu0 %v342
        %617 = vmatprep.subr.mxu0 0.0
        %618 = vmatpush1.msra.mxu0 %v343
        %619 = vmatprep.subr.mxu0 0.0
        %620 = vmatpush1.msra.mxu0 %v344
        %621 = vmatprep.subr.mxu0 0.0
        %622 = vmatpush1.msra.mxu0 %v345
        %623 = vmatprep.subr.mxu0 0.0
        %624 = vmatpush1.msra.mxu0 %v346
        %625 = vmatprep.subr.mxu0 0.0
        %626 = vmatpush1.msra.mxu0 %v347
        %627 = vmatprep.subr.mxu0 0.0
        %628 = vmatpush1.msra.mxu0 %v348
        %629 = vmatprep.subr.mxu0 0.0
        %630 = vmatpush1.msra.mxu0 %v349
        %631 = vmatprep.mubr.f32.mxu0 %v221
        %632 = vmatmul.mubr.f32.gmra.mrb[0].mxu0 %v220
        %v633 = vpop.f32.mrb[0].mxu0
        %v634 = vadd.f32 %v564, %v633
        %v635 = vpop.f32.mrb[0].mxu0
        %636 = vdwg.mxu0
        %vm637 = vcmask 261120
        %638 = vst.msk [vmem:[%s201] sm:$0xff] %vm637, %v634
        %s639 = sand.u32 %s117, 1
        %s640 = scalar_lea.sflag [#allocation3], %s639
        %s641 = sand.u32 %s117, 1
        %s642 = smul.addr %s641, 8
        %s643 = scalar_lea.vmem [#allocation2], %s642
        // Predicated region
        $region33: #{patch_embed_forward.1} parent=31 // pred_check
          %p644 = pneg %p127
        $region34: #{patch_embed_forward.1} parent=31 // pred_check_branch
          %646 = sbr.rel (%p644) target = $region36
        $region35: #{patch_embed_forward.1} parent=31 // pred_region
          %s648 = ssub.s32 128, 128
          %649 = vsyncadd %s640, %s648
          %s650 = sadd.s32 %s22, %s21
          %s651 = smul.addr %s650, 128
          %s652 = scalar_lea.hbm %s3, %s651
          %s654 = sshll.u32 %s643, 4
          %s655 = int_to_ptr.vmem [resolvable:$true] %s654
          %657 = dma.vmem_to_hbm [thread:$0]  %s655, 128, %s652, %s640
        $region36: #{patch_embed_forward.1} parent=31 // pred_fallthru
          _
      $region32: #{patch_embed_forward.1} parent=5 // pred_fallthru
        _
      %p658 = scmp.le.s32.totalorder 2, %s12
      // Predicated region
      $region37: #{patch_embed_forward.1} parent=5 // pred_check
        %p659 = pneg %p658
      $region38: #{patch_embed_forward.1} parent=5 // pred_check_branch
        %661 = sbr.rel (%p659) target = $region40
      $region39: #{patch_embed_forward.1} parent=5 // pred_region
        %s662 = ssub.s32 %s12, 2
        // Predicated region
        $region41: #{patch_embed_forward.1} parent=39 // pred_check
          %p663 = pneg %p133
        $region42: #{patch_embed_forward.1} parent=39 // pred_check_branch
          %665 = sbr.rel (%p663) target = $region44
        $region43: #{patch_embed_forward.1} parent=39 // pred_region
          %s666 = sand.u32 %s118, 1
          %s667 = scalar_lea.sflag [#allocation3], %s666
          %s668 = sand.u32 %s118, 1
          %s669 = smul.addr %s668, 8
          %s670 = scalar_lea.vmem [#allocation2], %s669
          %671 = dma.done %s667, 128
        $region44: #{patch_embed_forward.1} parent=39 // pred_fallthru
          _
      $region40: #{patch_embed_forward.1} parent=5 // pred_fallthru
        _
    $region6: #{patch_embed_forward.1} parent=1 // loop_footer
      %s16 = sadd.s32 1, %s12
    $region7: #{patch_embed_forward.1} parent=1 // loop_footer_branch
      %11 = sbr.rel target = $region3
    $region8: #{patch_embed_forward.1} parent=1 // loop_exit
      _
    %672 = vsyncpa [#allocation3], 1
    %s673 = scalar_lea.sflag [#allocation3], 1
    %674 = vsyncpa %s673, 1

// kernel: patch_embed_forward.1
$region0: #{patch_embed_forward.1}
  #allocation0 [shape = 'u32[]', space=smem, size = 0x4, offset = 0x4, fixed_abs, tag = 'smem constant byte address 0x4 - core index']
  #allocation1 [shape = 'u32[144,128]{1,0:T(1,128)}', space=vmem, size = 0x12000, scoped, tag = 'internal scratch']
  %s0 = inlined_call_operand.vmem [shape: f32[16,1024], index: 0, kind: input, shape index: {}]
  %s1 = inlined_call_operand.vmem [shape: f32[1024,32], index: 1, kind: input, shape index: {}]
  %s2 = inlined_call_operand.vmem [shape: f32[1,32], index: 2, kind: input, shape index: {}]
  %s3 = inlined_call_operand.hbm [shape: f32[16,32], index: 3, kind: output, shape index: {}]
  %s4 = sld [smem:[#allocation0]]
  $region45: #{patch_embed_forward.1} parent=0
    _
  %s6 = ssub.s32 1, %s4
  %s7 = scalar_select 0, %s6, %s4
  $region1: #{patch_embed_forward.1} parent=0
    #allocation2 [shape = 'u8[8192]{0}', space=vmem, size = 0x2000, scoped, tag = 'output window, operand 0']
    #allocation3 [shape = 's32[2]{0}', space=sflag, size = 0x8, scoped, tag = 'scoped memory for patch_embed_forward.1']
    %8 = vsyncpa [#allocation3], 0
    %s9 = scalar_lea.sflag [#allocation3], 1
    %10 = vsyncpa %s9, 0
    loop: start=0, step=1, limit=4
    $region2: #{patch_embed_forward.1} parent=1 // loop_pre_header
      _
    $region3: #{patch_embed_forward.1} parent=1 // loop_header
      %s12 = sphi 0, %s16
      %p13 = scmp.ge.s32.totalorder %s12, 4
      %s19 = sphi 0, %s31
      %s20 = sphi 0, %s27
      %s21 = sphi 0, %s19
      %s22 = sphi 0, %s20
      %s23 = sphi 0, %s21
      %s24 = sphi 0, %s22
      %s34 = sphi 0, %s36
      %s37 = sphi 0, %s34
      %s38 = sphi 0, %s37
      %s54 = sphi 0, %s38
      %s60 = sphi 0, %s62
      %s63 = sphi 0, %s60
      %s64 = sphi 0, %s63
      %s80 = sphi 0, %s64
      %s86 = sphi 0, %s88
      %s89 = sphi 0, %s86
      %s90 = sphi 0, %s89
      %s106 = sphi 0, %s90
      %s114 = sphi 0, %s116
      %s117 = sphi 0, %s114
      %s118 = sphi 0, %s117
      %s134 = sphi 0, %s118
    $region4: #{patch_embed_forward.1} parent=1 // loop_header_branch
      %15 = sbr.rel (%p13) target = $region8
    $region5: #{patch_embed_forward.1} parent=1 // loop_body
      %s17 = ssub.s32 %s12, 1
      %s18 = ssub.s32 %s12, 2
      %s25 = sadd.s32 1, %s20
      %p26 = scmp.ge.s32.totalorder %s25, 1
      %s27 = scalar_select %p26, 0, %s25
      %s28 = sadd.s32 1, %s19
      %s29 = scalar_select %p26, %s28, %s19
      %p30 = scmp.ge.s32.totalorder %s29, 2
      %s31 = scalar_select %p30, 0, %s29
      %s32 = ssub.s32 %s19, %s31
      %p33 = scmp.eq.s32.totalorder %s32, 0
      %s35 = sadd.s32 %s34, 1
      %s36 = scalar_select %p33, %s34, %s35
      %p39 = pneg %p33
      %p40 = scmp.eq.s32.totalorder %s12, 1
      %p41 = por %p39, %p40
      %p42 = scmp.ne.s32.totalorder %s34, %s37
      %p43 = scmp.eq.s32.totalorder %s12, 0
      %p44 = por %p42, %p43
      %p45 = scmp.ne.s32.totalorder %s34, %s37
      %p46 = scmp.eq.s32.totalorder %s17, 1
      %p47 = por %p45, %p46
      %p48 = scmp.ne.s32.totalorder %s37, %s38
      %p49 = scmp.eq.s32.totalorder %s17, 0
      %p50 = por %p48, %p49
      %p51 = scmp.ne.s32.totalorder %s37, %s38
      %p52 = scmp.eq.s32.totalorder %s18, 1
      %p53 = por %p51, %p52
      %p55 = scmp.ne.s32.totalorder %s38, %s54
      %p56 = scmp.eq.s32.totalorder %s18, 0
      %p57 = por %p55, %p56
      %s58 = ssub.s32 %s20, %s27
      %p59 = scmp.eq.s32.totalorder %s58, 0
      %s61 = sadd.s32 %s60, 1
      %s62 = scalar_select %p59, %s60, %s61
      %p65 = pneg %p59
      %p66 = scmp.eq.s32.totalorder %s12, 1
      %p67 = por %p65, %p66
      %p68 = scmp.ne.s32.totalorder %s60, %s63
      %p69 = scmp.eq.s32.totalorder %s12, 0
      %p70 = por %p68, %p69
      %p71 = scmp.ne.s32.totalorder %s60, %s63
      %p72 = scmp.eq.s32.totalorder %s17, 1
      %p73 = por %p71, %p72
      %p74 = scmp.ne.s32.totalorder %s63, %s64
      %p75 = scmp.eq.s32.totalorder %s17, 0
      %p76 = por %p74, %p75
      %p77 = scmp.ne.s32.totalorder %s63, %s64
      %p78 = scmp.eq.s32.totalorder %s18, 1
      %p79 = por %p77, %p78
      %p81 = scmp.ne.s32.totalorder %s64, %s80
      %p82 = scmp.eq.s32.totalorder %s18, 0
      %p83 = por %p81, %p82
      %s84 = ssub.s32 %s20, %s27
      %p85 = scmp.eq.s32.totalorder %s84, 0
      %s87 = sadd.s32 %s86, 1
      %s88 = scalar_select %p85, %s86, %s87
      %p91 = pneg %p85
      %p92 = scmp.eq.s32.totalorder %s12, 1
      %p93 = por %p91, %p92
      %p94 = scmp.ne.s32.totalorder %s86, %s89
      %p95 = scmp.eq.s32.totalorder %s12, 0
      %p96 = por %p94, %p95
      %p97 = scmp.ne.s32.totalorder %s86, %s89
      %p98 = scmp.eq.s32.totalorder %s17, 1
      %p99 = por %p97, %p98
      %p100 = scmp.ne.s32.totalorder %s89, %s90
      %p101 = scmp.eq.s32.totalorder %s17, 0
      %p102 = por %p100, %p101
      %p103 = scmp.ne.s32.totalorder %s89, %s90
      %p104 = scmp.eq.s32.totalorder %s18, 1
      %p105 = por %p103, %p104
      %p107 = scmp.ne.s32.totalorder %s90, %s106
      %p108 = scmp.eq.s32.totalorder %s18, 0
      %p109 = por %p107, %p108
      %s110 = ssub.s32 %s19, %s31
      %s111 = ssub.s32 %s20, %s27
      %s112 = sor.u32 %s110, %s111
      %p113 = scmp.eq.s32.totalorder %s112, 0
      %s115 = sadd.s32 %s114, 1
      %s116 = scalar_select %p113, %s114, %s115
      %p119 = pneg %p113
      %p120 = scmp.eq.s32.totalorder %s12, 1
      %p121 = por %p119, %p120
      %p122 = scmp.ne.s32.totalorder %s114, %s117
      %p123 = scmp.eq.s32.totalorder %s12, 0
      %p124 = por %p122, %p123
      %p125 = scmp.ne.s32.totalorder %s114, %s117
      %p126 = scmp.eq.s32.totalorder %s17, 1
      %p127 = por %p125, %p126
      %p128 = scmp.ne.s32.totalorder %s117, %s118
      %p129 = scmp.eq.s32.totalorder %s17, 0
      %p130 = por %p128, %p129
      %p131 = scmp.ne.s32.totalorder %s117, %s118
      %p132 = scmp.eq.s32.totalorder %s18, 1
      %p133 = por %p131, %p132
      %p135 = scmp.ne.s32.totalorder %s118, %s134
      %p136 = scmp.eq.s32.totalorder %s18, 0
      %p137 = por %p135, %p136
      %p138 = scmp.le.s32.totalorder 1, %s12
      %p139 = scmp.lt.s32.totalorder %s12, 3
      %p140 = pnand %p138, %p139
      %p141 = pneg %p140
      // Predicated region
      $region9: #{patch_embed_forward.1} parent=5 // pred_check
        _
      $region10: #{patch_embed_forward.1} parent=5 // pred_check_branch
        %143 = sbr.rel (%p140) target = $region12
      $region11: #{patch_embed_forward.1} parent=5 // pred_region
        %s144 = ssub.s32 %s12, 1
        // Predicated region
        $region13: #{patch_embed_forward.1} parent=11 // pred_check
          %p145 = pneg %p76
        $region14: #{patch_embed_forward.1} parent=11 // pred_check_branch
          %147 = sbr.rel (%p145) target = $region16
        $region15: #{patch_embed_forward.1} parent=11 // pred_region
          %p148 = scmp.lt.s32.totalorder %s22, 0
          %s149 = scalar_select %p148, %s22, 0
          %s150 = smul.addr %s149, 8
          %s151 = scalar_lea.vmem %s1, %s150
        $region16: #{patch_embed_forward.1} parent=11 // pred_fallthru
          _
        // Predicated region
        $region17: #{patch_embed_forward.1} parent=11 // pred_check
          %p152 = pneg %p102
        $region18: #{patch_embed_forward.1} parent=11 // pred_check_branch
          %154 = sbr.rel (%p152) target = $region20
        $region19: #{patch_embed_forward.1} parent=11 // pred_region
          %p155 = scmp.lt.s32.totalorder %s22, 0
          %s156 = scalar_select %p155, %s22, 0
          %s157 = scalar_lea.vmem %s2, %s156
        $region20: #{patch_embed_forward.1} parent=11 // pred_fallthru
          _
      $region12: #{patch_embed_forward.1} parent=5 // pred_fallthru
        _
      %p158 = scmp.lt.s32.totalorder %s12, 2
      // Predicated region
      $region21: #{patch_embed_forward.1} parent=5 // pred_check
        %p159 = pneg %p158
      $region22: #{patch_embed_forward.1} parent=5 // pred_check_branch
        %161 = sbr.rel (%p159) target = $region24
      $region23: #{patch_embed_forward.1} parent=5 // pred_region
        // Predicated region
        $region25: #{patch_embed_forward.1} parent=23 // pred_check
          %p162 = pneg %p44
        $region26: #{patch_embed_forward.1} parent=23 // pred_check_branch
          %164 = sbr.rel (%p162) target = $region28
        $region27: #{patch_embed_forward.1} parent=23 // pred_region
          %p165 = scmp.lt.s32.totalorder %s19, 1
          %s166 = scalar_select %p165, %s19, 1
          %s167 = smul.addr %s166, 8
          %s168 = smul.addr %s167, 8
          %s169 = scalar_lea.vmem %s0, %s168
        $region28: #{patch_embed_forward.1} parent=23 // pred_fallthru
          _
      $region24: #{patch_embed_forward.1} parent=5 // pred_fallthru
        _
      %p170 = scmp.le.s32.totalorder 1, %s12
      %p171 = scmp.lt.s32.totalorder %s12, 3
      %p172 = pnand %p170, %p171
      %p173 = pneg %p172
      // Predicated region
      $region29: #{patch_embed_forward.1} parent=5 // pred_check
        _
      $region30: #{patch_embed_forward.1} parent=5 // pred_check_branch
        %175 = sbr.rel (%p172) target = $region32
      $region31: #{patch_embed_forward.1} parent=5 // pred_region
        %s176 = ssub.s32 %s12, 1
        %p177 = scmp.lt.s32.totalorder %s21, 1
        %s178 = scalar_select %p177, %s21, 1
        %s179 = smul.addr %s178, 8
        %s180 = smul.addr %s179, 8
        %s181 = scalar_lea.vmem %s0, %s180
        %p182 = pneg %p50
        %p183 = pneg %p47
        %p184 = scmp.lt.s32.totalorder %s22, 0
        %s185 = scalar_select %p184, %s22, 0
        %s186 = smul.addr %s185, 8
        %s187 = scalar_lea.vmem %s1, %s186
        %p188 = pneg %p76
        %p189 = pneg %p73
        %p190 = scmp.lt.s32.totalorder %s22, 0
        %s191 = scalar_select %p190, %s22, 0
        %s192 = scalar_lea.vmem %s2, %s191
        %p193 = pneg %p102
        %p194 = pneg %p99
        %p195 = pneg %p130
        %p196 = pneg %p127
        %s197 = sand.u32 %s117, 1
        %s198 = scalar_lea.sflag [#allocation3], %s197
        %s199 = sand.u32 %s117, 1
        %s200 = smul.addr %s199, 8
        %s201 = scalar_lea.vmem [#allocation2], %s200
        %p202 = scmp.lt.s32.totalorder %s21, 1
        %s203 = scalar_select %p202, %s21, 1
        %s204 = smul.addr %s203, 8
        %s205 = smul.addr %s204, 8
        %s206 = scalar_lea.vmem %s0, %s205
        %p207 = scmp.lt.s32.totalorder %s22, 0
        %s208 = scalar_select %p207, %s22, 0
        %s209 = smul.addr %s208, 8
        %s210 = scalar_lea.vmem %s1, %s209
        %p211 = scmp.lt.s32.totalorder %s22, 0
        %s212 = scalar_select %p211, %s22, 0
        %s213 = scalar_lea.vmem %s2, %s212
        %v214 = vld [vmem:[%s206] sm:$0xff]
        %v215 = vld [vmem:[%s206 + $0x8] sm:$0xff]
        %v216 = vld [vmem:[%s206 + $0x10] sm:$0xff]
        %v217 = vld [vmem:[%s206 + $0x18] sm:$0xff]
        %v218 = vld [vmem:[%s206 + $0x20] sm:$0xff]
        %v219 = vld [vmem:[%s206 + $0x28] sm:$0xff]
        %v220 = vld [vmem:[%s206 + $0x30] sm:$0xff]
        %v221 = vld [vmem:[%s206 + $0x38] sm:$0xff]
        %v222 = vld [vmem:[%s210] sm:$0xff]
        %v223 = vld [vmem:[%s210 + $0x8] sm:$0xff]
        %v224 = vld [vmem:[%s210 + $0x10] sm:$0xff]
        %v225 = vld [vmem:[%s210 + $0x18] sm:$0xff]
        %v226 = vld [vmem:[%s210 + $0x20] sm:$0xff]
        %v227 = vld [vmem:[%s210 + $0x28] sm:$0xff]
        %v228 = vld [vmem:[%s210 + $0x30] sm:$0xff]
        %v229 = vld [vmem:[%s210 + $0x38] sm:$0xff]
        %v230 = vld [vmem:[%s210 + $0x40] sm:$0xff]
        %v231 = vld [vmem:[%s210 + $0x48] sm:$0xff]
        %v232 = vld [vmem:[%s210 + $0x50] sm:$0xff]
        %v233 = vld [vmem:[%s210 + $0x58] sm:$0xff]
        %v234 = vld [vmem:[%s210 + $0x60] sm:$0xff]
        %v235 = vld [vmem:[%s210 + $0x68] sm:$0xff]
        %v236 = vld [vmem:[%s210 + $0x70] sm:$0xff]
        %v237 = vld [vmem:[%s210 + $0x78] sm:$0xff]
        %v238 = vld [vmem:[%s210 + $0x80] sm:$0xff]
        %v239 = vld [vmem:[%s210 + $0x88] sm:$0xff]
        %v240 = vld [vmem:[%s210 + $0x90] sm:$0xff]
        %v241 = vld [vmem:[%s210 + $0x98] sm:$0xff]
        %v242 = vld [vmem:[%s210 + $0xa0] sm:$0xff]
        %v243 = vld [vmem:[%s210 + $0xa8] sm:$0xff]
        %v244 = vld [vmem:[%s210 + $0xb0] sm:$0xff]
        %v245 = vld [vmem:[%s210 + $0xb8] sm:$0xff]
        %v246 = vld [vmem:[%s210 + $0xc0] sm:$0xff]
        %v247 = vld [vmem:[%s210 + $0xc8] sm:$0xff]
        %v248 = vld [vmem:[%s210 + $0xd0] sm:$0xff]
        %v249 = vld [vmem:[%s210 + $0xd8] sm:$0xff]
        %v250 = vld [vmem:[%s210 + $0xe0] sm:$0xff]
        %v251 = vld [vmem:[%s210 + $0xe8] sm:$0xff]
        %v252 = vld [vmem:[%s210 + $0xf0] sm:$0xff]
        %v253 = vld [vmem:[%s210 + $0xf8] sm:$0xff]
        %v254 = vld [vmem:[%s210 + $0x100] sm:$0xff]
        %v255 = vld [vmem:[%s210 + $0x108] sm:$0xff]
        %v256 = vld [vmem:[%s210 + $0x110] sm:$0xff]
        %v257 = vld [vmem:[%s210 + $0x118] sm:$0xff]
        %v258 = vld [vmem:[%s210 + $0x120] sm:$0xff]
        %v259 = vld [vmem:[%s210 + $0x128] sm:$0xff]
        %v260 = vld [vmem:[%s210 + $0x130] sm:$0xff]
        %v261 = vld [vmem:[%s210 + $0x138] sm:$0xff]
        %v262 = vld [vmem:[%s210 + $0x140] sm:$0xff]
        %v263 = vld [vmem:[%s210 + $0x148] sm:$0xff]
        %v264 = vld [vmem:[%s210 + $0x150] sm:$0xff]
        %v265 = vld [vmem:[%s210 + $0x158] sm:$0xff]
        %v266 = vld [vmem:[%s210 + $0x160] sm:$0xff]
        %v267 = vld [vmem:[%s210 + $0x168] sm:$0xff]
        %v268 = vld [vmem:[%s210 + $0x170] sm:$0xff]
        %v269 = vld [vmem:[%s210 + $0x178] sm:$0xff]
        %v270 = vld [vmem:[%s210 + $0x180] sm:$0xff]
        %v271 = vld [vmem:[%s210 + $0x188] sm:$0xff]
        %v272 = vld [vmem:[%s210 + $0x190] sm:$0xff]
        %v273 = vld [vmem:[%s210 + $0x198] sm:$0xff]
        %v274 = vld [vmem:[%s210 + $0x1a0] sm:$0xff]
        %v275 = vld [vmem:[%s210 + $0x1a8] sm:$0xff]
        %v276 = vld [vmem:[%s210 + $0x1b0] sm:$0xff]
        %v277 = vld [vmem:[%s210 + $0x1b8] sm:$0xff]
        %v278 = vld [vmem:[%s210 + $0x1c0] sm:$0xff]
        %v279 = vld [vmem:[%s210 + $0x1c8] sm:$0xff]
        %v280 = vld [vmem:[%s210 + $0x1d0] sm:$0xff]
        %v281 = vld [vmem:[%s210 + $0x1d8] sm:$0xff]
        %v282 = vld [vmem:[%s210 + $0x1e0] sm:$0xff]
        %v283 = vld [vmem:[%s210 + $0x1e8] sm:$0xff]
        %v284 = vld [vmem:[%s210 + $0x1f0] sm:$0xff]
        %v285 = vld [vmem:[%s210 + $0x1f8] sm:$0xff]
        %v286 = vld [vmem:[%s210 + $0x200] sm:$0xff]
        %v287 = vld [vmem:[%s210 + $0x208] sm:$0xff]
        %v288 = vld [vmem:[%s210 + $0x210] sm:$0xff]
        %v289 = vld [vmem:[%s210 + $0x218] sm:$0xff]
        %v290 = vld [vmem:[%s210 + $0x220] sm:$0xff]
        %v291 = vld [vmem:[%s210 + $0x228] sm:$0xff]
        %v292 = vld [vmem:[%s210 + $0x230] sm:$0xff]
        %v293 = vld [vmem:[%s210 + $0x238] sm:$0xff]
        %v294 = vld [vmem:[%s210 + $0x240] sm:$0xff]
        %v295 = vld [vmem:[%s210 + $0x248] sm:$0xff]
        %v296 = vld [vmem:[%s210 + $0x250] sm:$0xff]
        %v297 = vld [vmem:[%s210 + $0x258] sm:$0xff]
        %v298 = vld [vmem:[%s210 + $0x260] sm:$0xff]
        %v299 = vld [vmem:[%s210 + $0x268] sm:$0xff]
        %v300 = vld [vmem:[%s210 + $0x270] sm:$0xff]
        %v301 = vld [vmem:[%s210 + $0x278] sm:$0xff]
        %v302 = vld [vmem:[%s210 + $0x280] sm:$0xff]
        %v303 = vld [vmem:[%s210 + $0x288] sm:$0xff]
        %v304 = vld [vmem:[%s210 + $0x290] sm:$0xff]
        %v305 = vld [vmem:[%s210 + $0x298] sm:$0xff]
        %v306 = vld [vmem:[%s210 + $0x2a0] sm:$0xff]
        %v307 = vld [vmem:[%s210 + $0x2a8] sm:$0xff]
        %v308 = vld [vmem:[%s210 + $0x2b0] sm:$0xff]
        %v309 = vld [vmem:[%s210 + $0x2b8] sm:$0xff]
        %v310 = vld [vmem:[%s210 + $0x2c0] sm:$0xff]
        %v311 = vld [vmem:[%s210 + $0x2c8] sm:$0xff]
        %v312 = vld [vmem:[%s210 + $0x2d0] sm:$0xff]
        %v313 = vld [vmem:[%s210 + $0x2d8] sm:$0xff]
        %v314 = vld [vmem:[%s210 + $0x2e0] sm:$0xff]
        %v315 = vld [vmem:[%s210 + $0x2e8] sm:$0xff]
        %v316 = vld [vmem:[%s210 + $0x2f0] sm:$0xff]
        %v317 = vld [vmem:[%s210 + $0x2f8] sm:$0xff]
        %v318 = vld [vmem:[%s210 + $0x300] sm:$0xff]
        %v319 = vld [vmem:[%s210 + $0x308] sm:$0xff]
        %v320 = vld [vmem:[%s210 + $0x310] sm:$0xff]
        %v321 = vld [vmem:[%s210 + $0x318] sm:$0xff]
        %v322 = vld [vmem:[%s210 + $0x320] sm:$0xff]
        %v323 = vld [vmem:[%s210 + $0x328] sm:$0xff]
        %v324 = vld [vmem:[%s210 + $0x330] sm:$0xff]
        %v325 = vld [vmem:[%s210 + $0x338] sm:$0xff]
        %v326 = vld [vmem:[%s210 + $0x340] sm:$0xff]
        %v327 = vld [vmem:[%s210 + $0x348] sm:$0xff]
        %v328 = vld [vmem:[%s210 + $0x350] sm:$0xff]
        %v329 = vld [vmem:[%s210 + $0x358] sm:$0xff]
        %v330 = vld [vmem:[%s210 + $0x360] sm:$0xff]
        %v331 = vld [vmem:[%s210 + $0x368] sm:$0xff]
        %v332 = vld [vmem:[%s210 + $0x370] sm:$0xff]
        %v333 = vld [vmem:[%s210 + $0x378] sm:$0xff]
        %v334 = vld [vmem:[%s210 + $0x380] sm:$0xff]
        %v335 = vld [vmem:[%s210 + $0x388] sm:$0xff]
        %v336 = vld [vmem:[%s210 + $0x390] sm:$0xff]
        %v337 = vld [vmem:[%s210 + $0x398] sm:$0xff]
        %v338 = vld [vmem:[%s210 + $0x3a0] sm:$0xff]
        %v339 = vld [vmem:[%s210 + $0x3a8] sm:$0xff]
        %v340 = vld [vmem:[%s210 + $0x3b0] sm:$0xff]
        %v341 = vld [vmem:[%s210 + $0x3b8] sm:$0xff]
        %v342 = vld [vmem:[%s210 + $0x3c0] sm:$0xff]
        %v343 = vld [vmem:[%s210 + $0x3c8] sm:$0xff]
        %v344 = vld [vmem:[%s210 + $0x3d0] sm:$0xff]
        %v345 = vld [vmem:[%s210 + $0x3d8] sm:$0xff]
        %v346 = vld [vmem:[%s210 + $0x3e0] sm:$0xff]
        %v347 = vld [vmem:[%s210 + $0x3e8] sm:$0xff]
        %v348 = vld [vmem:[%s210 + $0x3f0] sm:$0xff]
        %v349 = vld [vmem:[%s210 + $0x3f8] sm:$0xff]
        %v350 = vld [vmem:[%s213] sm:$0x1]
        %v352 = vlaneseq
        %v353 = vshrl.u32 %v352, 7
        %v354 = vsub.s32 0, %v353
        %v355 = vrot.slane %v350, %v354
        %357 = vmatprep.subr.mxu0 0.0
        %358 = vmatpush1.msra.mxu0 %v222
        %359 = vmatprep.subr.mxu0 0.0
        %360 = vmatpush1.msra.mxu0 %v223
        %361 = vmatprep.subr.mxu0 0.0
        %362 = vmatpush1.msra.mxu0 %v224
        %363 = vmatprep.subr.mxu0 0.0
        %364 = vmatpush1.msra.mxu0 %v225
        %365 = vmatprep.subr.mxu0 0.0
        %366 = vmatpush1.msra.mxu0 %v226
        %367 = vmatprep.subr.mxu0 0.0
        %368 = vmatpush1.msra.mxu0 %v227
        %369 = vmatprep.subr.mxu0 0.0
        %370 = vmatpush1.msra.mxu0 %v228
        %371 = vmatprep.subr.mxu0 0.0
        %372 = vmatpush1.msra.mxu0 %v229
        %373 = vmatprep.subr.mxu0 0.0
        %374 = vmatpush1.msra.mxu0 %v230
        %375 = vmatprep.subr.mxu0 0.0
        %376 = vmatpush1.msra.mxu0 %v231
        %377 = vmatprep.subr.mxu0 0.0
        %378 = vmatpush1.msra.mxu0 %v232
        %379 = vmatprep.subr.mxu0 0.0
        %380 = vmatpush1.msra.mxu0 %v233
        %381 = vmatprep.subr.mxu0 0.0
        %382 = vmatpush1.msra.mxu0 %v234
        %383 = vmatprep.subr.mxu0 0.0
        %384 = vmatpush1.msra.mxu0 %v235
        %385 = vmatprep.subr.mxu0 0.0
        %386 = vmatpush1.msra.mxu0 %v236
        %387 = vmatprep.subr.mxu0 0.0
        %388 = vmatpush1.msra.mxu0 %v237
        %389 = vmatprep.subr.mxu0 0.0
        %390 = vmatpush1.msra.mxu0 %v238
        %391 = vmatprep.subr.mxu0 0.0
        %392 = vmatpush1.msra.mxu0 %v239
        %393 = vmatprep.subr.mxu0 0.0
        %394 = vmatpush1.msra.mxu0 %v240
        %395 = vmatprep.subr.mxu0 0.0
        %396 = vmatpush1.msra.mxu0 %v241
        %397 = vmatprep.subr.mxu0 0.0
        %398 = vmatpush1.msra.mxu0 %v242
        %399 = vmatprep.subr.mxu0 0.0
        %400 = vmatpush1.msra.mxu0 %v243
        %401 = vmatprep.subr.mxu0 0.0
        %402 = vmatpush1.msra.mxu0 %v244
        %403 = vmatprep.subr.mxu0 0.0
        %404 = vmatpush1.msra.mxu0 %v245
        %405 = vmatprep.subr.mxu0 0.0
        %406 = vmatpush1.msra.mxu0 %v246
        %407 = vmatprep.subr.mxu0 0.0
        %408 = vmatpush1.msra.mxu0 %v247
        %409 = vmatprep.subr.mxu0 0.0
        %410 = vmatpush1.msra.mxu0 %v248
        %411 = vmatprep.subr.mxu0 0.0
        %412 = vmatpush1.msra.mxu0 %v249
        %413 = vmatprep.subr.mxu0 0.0
        %414 = vmatpush1.msra.mxu0 %v250
        %415 = vmatprep.subr.mxu0 0.0
        %416 = vmatpush1.msra.mxu0 %v251
        %417 = vmatprep.subr.mxu0 0.0
        %418 = vmatpush1.msra.mxu0 %v252
        %419 = vmatprep.subr.mxu0 0.0
        %420 = vmatpush1.msra.mxu0 %v253
        %421 = vmatprep.mubr.f32.mxu0 %v215
        %422 = vmatmul.mubr.f32.gmra.mrb[0].mxu0 %v214
        %v423 = vpop.f32.mrb[0].mxu0
        %v424 = vadd.f32 %v355, %v423
        %v425 = vpop.f32.mrb[0].mxu0
        %426 = vdwg.mxu0
        %427 = vmatprep.subr.mxu0 0.0
        %428 = vmatpush1.msra.mxu0 %v254
        %429 = vmatprep.subr.mxu0 0.0
        %430 = vmatpush1.msra.mxu0 %v255
        %431 = vmatprep.subr.mxu0 0.0
        %432 = vmatpush1.msra.mxu0 %v256
        %433 = vmatprep.subr.mxu0 0.0
        %434 = vmatpush1.msra.mxu0 %v257
        %435 = vmatprep.subr.mxu0 0.0
        %436 = vmatpush1.msra.mxu0 %v258
        %437 = vmatprep.subr.mxu0 0.0
        %438 = vmatpush1.msra.mxu0 %v259
        %439 = vmatprep.subr.mxu0 0.0
        %440 = vmatpush1.msra.mxu0 %v260
        %441 = vmatprep.subr.mxu0 0.0
        %442 = vmatpush1.msra.mxu0 %v261
        %443 = vmatprep.subr.mxu0 0.0
        %444 = vmatpush1.msra.mxu0 %v262
        %445 = vmatprep.subr.mxu0 0.0
        %446 = vmatpush1.msra.mxu0 %v263
        %447 = vmatprep.subr.mxu0 0.0
        %448 = vmatpush1.msra.mxu0 %v264
        %449 = vmatprep.subr.mxu0 0.0
        %450 = vmatpush1.msra.mxu0 %v265
        %451 = vmatprep.subr.mxu0 0.0
        %452 = vmatpush1.msra.mxu0 %v266
        %453 = vmatprep.subr.mxu0 0.0
        %454 = vmatpush1.msra.mxu0 %v267
        %455 = vmatprep.subr.mxu0 0.0
        %456 = vmatpush1.msra.mxu0 %v268
        %457 = vmatprep.subr.mxu0 0.0
        %458 = vmatpush1.msra.mxu0 %v269
        %459 = vmatprep.subr.mxu0 0.0
        %460 = vmatpush1.msra.mxu0 %v270
        %461 = vmatprep.subr.mxu0 0.0
        %462 = vmatpush1.msra.mxu0 %v271
        %463 = vmatprep.subr.mxu0 0.0
        %464 = vmatpush1.msra.mxu0 %v272
        %465 = vmatprep.subr.mxu0 0.0
        %466 = vmatpush1.msra.mxu0 %v273
        %467 = vmatprep.subr.mxu0 0.0
        %468 = vmatpush1.msra.mxu0 %v274
        %469 = vmatprep.subr.mxu0 0.0
        %470 = vmatpush1.msra.mxu0 %v275
        %471 = vmatprep.subr.mxu0 0.0
        %472 = vmatpush1.msra.mxu0 %v276
        %473 = vmatprep.subr.mxu0 0.0
        %474 = vmatpush1.msra.mxu0 %v277
        %475 = vmatprep.subr.mxu0 0.0
        %476 = vmatpush1.msra.mxu0 %v278
        %477 = vmatprep.subr.mxu0 0.0
        %478 = vmatpush1.msra.mxu0 %v279
        %479 = vmatprep.subr.mxu0 0.0
        %480 = vmatpush1.msra.mxu0 %v280
        %481 = vmatprep.subr.mxu0 0.0
        %482 = vmatpush1.msra.mxu0 %v281
        %483 = vmatprep.subr.mxu0 0.0
        %484 = vmatpush1.msra.mxu0 %v282
        %485 = vmatprep.subr.mxu0 0.0
        %486 = vmatpush1.msra.mxu0 %v283
        %487 = vmatprep.subr.mxu0 0.0
        %488 = vmatpush1.msra.mxu0 %v284
        %489 = vmatprep.subr.mxu0 0.0
        %490 = vmatpush1.msra.mxu0 %v285
        %491 = vmatprep.mubr.f32.mxu0 %v217
        %492 = vmatmul.mubr.f32.gmra.mrb[0].mxu0 %v216
        %v493 = vpop.f32.mrb[0].mxu0
        %v494 = vadd.f32 %v424, %v493
        %v495 = vpop.f32.mrb[0].mxu0
        %496 = vdwg.mxu0
        %497 = vmatprep.subr.mxu0 0.0
        %498 = vmatpush1.msra.mxu0 %v286
        %499 = vmatprep.subr.mxu0 0.0
        %500 = vmatpush1.msra.mxu0 %v287
        %501 = vmatprep.subr.mxu0 0.0
        %502 = vmatpush1.msra.mxu0 %v288
        %503 = vmatprep.subr.mxu0 0.0
        %504 = vmatpush1.msra.mxu0 %v289
        %505 = vmatprep.subr.mxu0 0.0
        %506 = vmatpush1.msra.mxu0 %v290
        %507 = vmatprep.subr.mxu0 0.0
        %508 = vmatpush1.msra.mxu0 %v291
        %509 = vmatprep.subr.mxu0 0.0
        %510 = vmatpush1.msra.mxu0 %v292
        %511 = vmatprep.subr.mxu0 0.0
        %512 = vmatpush1.msra.mxu0 %v293
        %513 = vmatprep.subr.mxu0 0.0
        %514 = vmatpush1.msra.mxu0 %v294
        %515 = vmatprep.subr.mxu0 0.0
        %516 = vmatpush1.msra.mxu0 %v295
        %517 = vmatprep.subr.mxu0 0.0
        %518 = vmatpush1.msra.mxu0 %v296
        %519 = vmatprep.subr.mxu0 0.0
        %520 = vmatpush1.msra.mxu0 %v297
        %521 = vmatprep.subr.mxu0 0.0
        %522 = vmatpush1.msra.mxu0 %v298
        %523 = vmatprep.subr.mxu0 0.0
        %524 = vmatpush1.msra.mxu0 %v299
        %525 = vmatprep.subr.mxu0 0.0
        %526 = vmatpush1.msra.mxu0 %v300
        %527 = vmatprep.subr.mxu0 0.0
        %528 = vmatpush1.msra.mxu0 %v301
        %529 = vmatprep.subr.mxu0 0.0
        %530 = vmatpush1.msra.mxu0 %v302
        %531 = vmatprep.subr.mxu0 0.0
        %532 = vmatpush1.msra.mxu0 %v303
        %533 = vmatprep.subr.mxu0 0.0
        %534 = vmatpush1.msra.mxu0 %v304
        %535 = vmatprep.subr.mxu0 0.0
        %536 = vmatpush1.msra.mxu0 %v305
        %537 = vmatprep.subr.mxu0 0.0
        %538 = vmatpush1.msra.mxu0 %v306
        %539 = vmatprep.subr.mxu0 0.0
        %540 = vmatpush1.msra.mxu0 %v307
        %541 = vmatprep.subr.mxu0 0.0
        %542 = vmatpush1.msra.mxu0 %v308
        %543 = vmatprep.subr.mxu0 0.0
        %544 = vmatpush1.msra.mxu0 %v309
        %545 = vmatprep.subr.mxu0 0.0
        %546 = vmatpush1.msra.mxu0 %v310
        %547 = vmatprep.subr.mxu0 0.0
        %548 = vmatpush1.msra.mxu0 %v311
        %549 = vmatprep.subr.mxu0 0.0
        %550 = vmatpush1.msra.mxu0 %v312
        %551 = vmatprep.subr.mxu0 0.0
        %552 = vmatpush1.msra.mxu0 %v313
        %553 = vmatprep.subr.mxu0 0.0
        %554 = vmatpush1.msra.mxu0 %v314
        %555 = vmatprep.subr.mxu0 0.0
        %556 = vmatpush1.msra.mxu0 %v315
        %557 = vmatprep.subr.mxu0 0.0
        %558 = vmatpush1.msra.mxu0 %v316
        %559 = vmatprep.subr.mxu0 0.0
        %560 = vmatpush1.msra.mxu0 %v317
        %561 = vmatprep.mubr.f32.mxu0 %v219
        %562 = vmatmul.mubr.f32.gmra.mrb[0].mxu0 %v218
        %v563 = vpop.f32.mrb[0].mxu0
        %v564 = vadd.f32 %v494, %v563
        %v565 = vpop.f32.mrb[0].mxu0
        %566 = vdwg.mxu0
        %567 = vmatprep.subr.mxu0 0.0
        %568 = vmatpush1.msra.mxu0 %v318
        %569 = vmatprep.subr.mxu0 0.0
        %570 = vmatpush1.msra.mxu0 %v319
        %571 = vmatprep.subr.mxu0 0.0
        %572 = vmatpush1.msra.mxu0 %v320
        %573 = vmatprep.subr.mxu0 0.0
        %574 = vmatpush1.msra.mxu0 %v321
        %575 = vmatprep.subr.mxu0 0.0
        %576 = vmatpush1.msra.mxu0 %v322
        %577 = vmatprep.subr.mxu0 0.0
        %578 = vmatpush1.msra.mxu0 %v323
        %579 = vmatprep.subr.mxu0 0.0
        %580 = vmatpush1.msra.mxu0 %v324
        %581 = vmatprep.subr.mxu0 0.0
        %582 = vmatpush1.msra.mxu0 %v325
        %583 = vmatprep.subr.mxu0 0.0
        %584 = vmatpush1.msra.mxu0 %v326
        %585 = vmatprep.subr.mxu0 0.0
        %586 = vmatpush1.msra.mxu0 %v327
        %587 = vmatprep.subr.mxu0 0.0
        %588 = vmatpush1.msra.mxu0 %v328
        %589 = vmatprep.subr.mxu0 0.0
        %590 = vmatpush1.msra.mxu0 %v329
        %591 = vmatprep.subr.mxu0 0.0
        %592 = vmatpush1.msra.mxu0 %v330
        %593 = vmatprep.subr.mxu0 0.0
        %594 = vmatpush1.msra.mxu0 %v331
        %595 = vmatprep.subr.mxu0 0.0
        %596 = vmatpush1.msra.mxu0 %v332
        %597 = vmatprep.subr.mxu0 0.0
        %598 = vmatpush1.msra.mxu0 %v333
        %599 = vmatprep.subr.mxu0 0.0
        %600 = vmatpush1.msra.mxu0 %v334
        %601 = vmatprep.subr.mxu0 0.0
        %602 = vmatpush1.msra.mxu0 %v335
        %603 = vmatprep.subr.mxu0 0.0
        %604 = vmatpush1.msra.mxu0 %v336
        %605 = vmatprep.subr.mxu0 0.0
        %606 = vmatpush1.msra.mxu0 %v337
        %607 = vmatprep.subr.mxu0 0.0
        %608 = vmatpush1.msra.mxu0 %v338
        %609 = vmatprep.subr.mxu0 0.0
        %610 = vmatpush1.msra.mxu0 %v339
        %611 = vmatprep.subr.mxu0 0.0
        %612 = vmatpush1.msra.mxu0 %v340
        %613 = vmatprep.subr.mxu0 0.0
        %614 = vmatpush1.msra.mxu0 %v341
        %615 = vmatprep.subr.mxu0 0.0
        %616 = vmatpush1.msra.mxu0 %v342
        %617 = vmatprep.subr.mxu0 0.0
        %618 = vmatpush1.msra.mxu0 %v343
        %619 = vmatprep.subr.mxu0 0.0
        %620 = vmatpush1.msra.mxu0 %v344
        %621 = vmatprep.subr.mxu0 0.0
        %622 = vmatpush1.msra.mxu0 %v345
        %623 = vmatprep.subr.mxu0 0.0
        %624 = vmatpush1.msra.mxu0 %v346
        %625 = vmatprep.subr.mxu0 0.0
        %626 = vmatpush1.msra.mxu0 %v347
        %627 = vmatprep.subr.mxu0 0.0
        %628 = vmatpush1.msra.mxu0 %v348
        %629 = vmatprep.subr.mxu0 0.0
        %630 = vmatpush1.msra.mxu0 %v349
        %631 = vmatprep.mubr.f32.mxu0 %v221
        %632 = vmatmul.mubr.f32.gmra.mrb[0].mxu0 %v220
        %v633 = vpop.f32.mrb[0].mxu0
        %v634 = vadd.f32 %v564, %v633
        %v635 = vpop.f32.mrb[0].mxu0
        %636 = vdwg.mxu0
        %vm637 = vcmask 261120
        %638 = vst.msk [vmem:[%s201] sm:$0xff] %vm637, %v634
        %s639 = sand.u32 %s117, 1
        %s640 = scalar_lea.sflag [#allocation3], %s639
        %s641 = sand.u32 %s117, 1
        %s642 = smul.addr %s641, 8
        %s643 = scalar_lea.vmem [#allocation2], %s642
        // Predicated region
        $region33: #{patch_embed_forward.1} parent=31 // pred_check
          %p644 = pneg %p127
        $region34: #{patch_embed_forward.1} parent=31 // pred_check_branch
          %646 = sbr.rel (%p644) target = $region36
        $region35: #{patch_embed_forward.1} parent=31 // pred_region
          %s648 = ssub.s32 128, 128
          %649 = vsyncadd %s640, %s648
          %s650 = sadd.s32 %s22, %s21
          %s651 = smul.addr %s650, 128
          %s652 = scalar_lea.hbm %s3, %s651
          %s654 = sshll.u32 %s643, 4
          %s655 = int_to_ptr.vmem [resolvable:$true] %s654
          %657 = dma.vmem_to_hbm [thread:$0]  %s655, 128, %s652, %s640
        $region36: #{patch_embed_forward.1} parent=31 // pred_fallthru
          _
      $region32: #{patch_embed_forward.1} parent=5 // pred_fallthru
        _
      %p658 = scmp.le.s32.totalorder 2, %s12
      // Predicated region
      $region37: #{patch_embed_forward.1} parent=5 // pred_check
        %p659 = pneg %p658
      $region38: #{patch_embed_forward.1} parent=5 // pred_check_branch
        %661 = sbr.rel (%p659) target = $region40
      $region39: #{patch_embed_forward.1} parent=5 // pred_region
        %s662 = ssub.s32 %s12, 2
        // Predicated region
        $region41: #{patch_embed_forward.1} parent=39 // pred_check
          %p663 = pneg %p133
        $region42: #{patch_embed_forward.1} parent=39 // pred_check_branch
          %665 = sbr.rel (%p663) target = $region44
        $region43: #{patch_embed_forward.1} parent=39 // pred_region
          %s666 = sand.u32 %s118, 1
          %s667 = scalar_lea.sflag [#allocation3], %s666
          %s668 = sand.u32 %s118, 1
          %s669 = smul.addr %s668, 8
          %s670 = scalar_lea.vmem [#allocation2], %s669
          %671 = dma.done %s667, 128
        $region44: #{patch_embed_forward.1} parent=39 // pred_fallthru
          _
      $region40: #{patch_embed_forward.1} parent=5 // pred_fallthru
        _
    $region6: #{patch_embed_forward.1} parent=1 // loop_footer
      %s16 = sadd.s32 1, %s12
    $region7: #{patch_embed_forward.1} parent=1 // loop_footer_branch
      %11 = sbr.rel target = $region3
    $region8: #{patch_embed_forward.1} parent=1 // loop_exit
      _
    %672 = vsyncpa [#allocation3], 1
    %s673 = scalar_lea.sflag [#allocation3], 1
    %674 = vsyncpa %s673, 1

</llo_original>
